<compile_context>
chip_gen: v5e
topology: v5e:2x2
jax: 0.10.0
libtpu: 0.0.40
codegen_flags: <defaults>
</compile_context>

<pallas_src>
import functools

import jax
import jax.numpy as jnp
import numpy as np
from jax import lax
from jax.experimental import pallas as pl
from jax.experimental.pallas import tpu as pltpu


# ---------------------------------------------------------------------------
# kernels
# ---------------------------------------------------------------------------
def _corr_kernel(h_ref, r_ref, cs_ref, ics_ref, msg_ref):
    """Grid = (edge_tiles,).  Circular correlation via fused real-DFT matmuls.

    corr = Re(IDFT(conj(DFT(h)) * DFT(r)))  ; 1/C folded into the inverse mat.
    """
    cp = msg_ref.shape[1]
    hf = jnp.dot(h_ref[...], cs_ref[...], preferred_element_type=jnp.float32)
    rf = jnp.dot(r_ref[...], cs_ref[...], preferred_element_type=jnp.float32)
    ha, hb = hf[:, :cp], hf[:, cp:]
    ra, rb = rf[:, :cp], rf[:, cp:]
    pr = ha * ra + hb * rb                       # f32 VPU math
    pi = hb * ra - ha * rb
    p = jnp.concatenate([pr.astype(jnp.bfloat16), pi.astype(jnp.bfloat16)],
                        axis=1)                  # [TK, 2*Cp] bf16
    msg_ref[...] = jnp.dot(p, ics_ref[...],
                           preferred_element_type=jnp.float32
                           ).astype(msg_ref.dtype)


def _scatter_project_kernel(blk_ref, cnt_ref, dst_ref, msg_ref, w_ref, b_ref,
                            out_ref, acc_ref):
    """Grid = (node_tiles [parallel], edge_blocks [arbitrary/reduction]).

    Edges are sorted by destination; scalar-prefetched tables give each node
    tile the edge blocks that can contain its destinations.  Scatter-add is a
    bf16 one-hot matmul on the MXU into an f32 VMEM accumulator.
    """
    kn = pl.program_id(0)
    ke = pl.program_id(1)
    tn = acc_ref.shape[0]
    tk = dst_ref.shape[1]

    @pl.when(ke == 0)
    def _():
        acc_ref[...] = jnp.zeros_like(acc_ref)

    @pl.when(ke < cnt_ref[kn])
    def _():
        row_ids = kn * tn + lax.broadcasted_iota(jnp.int32, (tn, tk), 0)
        onehot = (row_ids == dst_ref[...]).astype(jnp.bfloat16)     # [TN, TK]
        acc_ref[...] += jnp.dot(onehot, msg_ref[...],
                                preferred_element_type=jnp.float32)

    @pl.when(ke == pl.num_programs(1) - 1)
    def _():
        out = jnp.dot(acc_ref[...].astype(jnp.bfloat16), w_ref[...],
                      preferred_element_type=jnp.float32) + b_ref[...]
        out_ref[...] = out.astype(out_ref.dtype)


# ---------------------------------------------------------------------------
# helpers
# ---------------------------------------------------------------------------
def _round_up(a, b):
    return (a + b - 1) // b * b


def _pad_to(a, shape):
    pads = [(0, t - s) for s, t in zip(a.shape, shape)]
    return jnp.pad(a, pads)


def _fused_dft_mats(c, c_pad):
    """Forward [cos | sin] (Cp x 2Cp) and inverse [cos ; -sin]/C (2Cp x Cp)."""
    idx = np.arange(c)
    ang = 2.0 * np.pi * np.outer(idx, idx) / float(c)
    cos = np.cos(ang).astype(np.float32)
    sin = np.sin(ang).astype(np.float32)
    cs = np.zeros((c_pad, 2 * c_pad), np.float32)
    cs[:c, :c] = cos
    cs[:c, c_pad:c_pad + c] = sin
    ics = np.zeros((2 * c_pad, c_pad), np.float32)
    ics[:c, :c] = cos / float(c)
    ics[c_pad:c_pad + c, :c] = -sin / float(c)
    return jnp.asarray(cs, jnp.bfloat16), jnp.asarray(ics, jnp.bfloat16)


# ---------------------------------------------------------------------------
# one CompGCNConv layer
# ---------------------------------------------------------------------------
def compgcn_conv(x, edge_index, edge_type, rel_embed, weight, rel_weight, bias,
                 num_rels):
    n, c = x.shape
    o = weight.shape[1]

    # ---- self-loop / zero-relation bookkeeping (mirrors PyTorch forward) ----
    self_loop = jnp.arange(n, dtype=edge_index.dtype)
    ei = jnp.concatenate([edge_index, jnp.stack([self_loop, self_loop])], axis=1)
    et = jnp.concatenate(
        [edge_type, jnp.full((n,), num_rels * 2, dtype=edge_type.dtype)], axis=0)
    rel_cat = jnp.concatenate(
        [rel_embed, jnp.zeros((1, c), rel_embed.dtype)], axis=0)

    # ---- sort edges by destination -> contiguous per-node-tile ranges ----
    dst = ei[1].astype(jnp.int32)
    order = jnp.argsort(dst)
    src_s = ei[0][order]
    et_s = et[order]
    dst_s = dst[order]

    # ---- per-edge gathers kept in XLA; stream bf16 into the kernels ----
    h = jnp.take(x, src_s, axis=0).astype(jnp.bfloat16)        # [E', C]
    r = jnp.take(rel_cat, et_s, axis=0).astype(jnp.bfloat16)   # [E', C]

    # ---- lane-dense padding & tiling ----
    e = h.shape[0]
    c_pad = _round_up(c, 128)
    o_pad = _round_up(o, 128)
    tk = min(2048, _round_up(e, 128))          # edge tile
    e_pad = _round_up(e, tk)
    n_eb = e_pad // tk                         # number of edge blocks
    tn = min(512, _round_up(n, 8))             # node tile
    n_pad = _round_up(n, tn)
    n_nt = n_pad // tn                         # number of node tiles

    h_p = _pad_to(h, (e_pad, c_pad))
    r_p = _pad_to(r, (e_pad, c_pad))
    cs, ics = _fused_dft_mats(c, c_pad)

    # ---- kernel A: circular correlation, one visit per edge tile ----
    corr_flops = 12 * e_pad * c_pad * c_pad
    corr_bytes = 2 * (3 * e_pad * c_pad + 4 * c_pad * c_pad)
    msg_p = pl.pallas_call(
        _corr_kernel,
        out_shape=jax.ShapeDtypeStruct((e_pad, c_pad), jnp.bfloat16),
        grid_spec=pltpu.PrefetchScalarGridSpec(
            num_scalar_prefetch=0,
            grid=(n_eb,),
            in_specs=[
                pl.BlockSpec((tk, c_pad), lambda ke: (ke, 0)),          # h
                pl.BlockSpec((tk, c_pad), lambda ke: (ke, 0)),          # r
                pl.BlockSpec((c_pad, 2 * c_pad), lambda ke: (0, 0)),    # [cos|sin]
                pl.BlockSpec((2 * c_pad, c_pad), lambda ke: (0, 0)),    # [cos;-sin]/C
            ],
            out_specs=pl.BlockSpec((tk, c_pad), lambda ke: (ke, 0)),
        ),
        compiler_params=pltpu.CompilerParams(
            dimension_semantics=("parallel",),
            vmem_limit_bytes=64 * 1024 * 1024),
        cost_estimate=pl.CostEstimate(flops=corr_flops, transcendentals=0,
                                      bytes_accessed=corr_bytes),
    )(h_p, r_p, cs, ics)

    # ---- scalar-prefetch tables: edge-block range per node tile ----
    dst_p = jnp.full((1, e_pad), -1, jnp.int32).at[0, :e].set(dst_s)
    bounds = jnp.arange(n_nt + 1, dtype=jnp.int32) * tn
    pos = jnp.searchsorted(dst_s, bounds, side='left').astype(jnp.int32)
    lo, hi = pos[:-1], pos[1:]
    bstart = jnp.minimum(lo // tk, n_eb - 1).astype(jnp.int32)
    bcount = jnp.where(hi > lo, (hi - 1) // tk - lo // tk + 1, 0).astype(jnp.int32)
    ke_ids = jnp.arange(n_eb, dtype=jnp.int32)[None, :]
    blk_tbl = (bstart[:, None]
               + jnp.minimum(ke_ids, jnp.maximum(bcount[:, None] - 1, 0)))
    blk_tbl = blk_tbl.reshape(-1).astype(jnp.int32)     # [n_nt * n_eb], clamped

    w_p = _pad_to(weight.astype(jnp.bfloat16), (c_pad, o_pad))
    b_p = _pad_to(bias.reshape(1, o).astype(jnp.float32), (1, o_pad))

    def _eblk(kn, ke, blk_ref, cnt_ref):
        return blk_ref[kn * n_eb + ke]

    scatter_steps = n_eb + n_nt                 # ~= real (non-skipped) steps
    scat_flops = (scatter_steps * 2 * tn * tk * c_pad
                  + n_nt * 2 * tn * c_pad * o_pad)
    scat_bytes = (scatter_steps * (2 * tk * c_pad + 4 * tk)
                  + 2 * c_pad * o_pad + 4 * o_pad + 4 * n_pad * o_pad)

    out_pad = pl.pallas_call(
        _scatter_project_kernel,
        out_shape=jax.ShapeDtypeStruct((n_pad, o_pad), jnp.float32),
        grid_spec=pltpu.PrefetchScalarGridSpec(
            num_scalar_prefetch=2,
            grid=(n_nt, n_eb),
            in_specs=[
                pl.BlockSpec((1, tk),
                             lambda kn, ke, blk, cnt: (0, _eblk(kn, ke, blk, cnt))),
                pl.BlockSpec((tk, c_pad),
                             lambda kn, ke, blk, cnt: (_eblk(kn, ke, blk, cnt), 0)),
                pl.BlockSpec((c_pad, o_pad), lambda kn, ke, blk, cnt: (0, 0)),
                pl.BlockSpec((1, o_pad), lambda kn, ke, blk, cnt: (0, 0)),
            ],
            out_specs=pl.BlockSpec((tn, o_pad), lambda kn, ke, blk, cnt: (kn, 0)),
            scratch_shapes=[pltpu.VMEM((tn, c_pad), jnp.float32)],
        ),
        compiler_params=pltpu.CompilerParams(
            dimension_semantics=("parallel", "arbitrary"),
            vmem_limit_bytes=64 * 1024 * 1024),
        cost_estimate=pl.CostEstimate(flops=scat_flops, transcendentals=0,
                                      bytes_accessed=scat_bytes),
    )(blk_tbl, bcount, dst_p, msg_p, w_p, b_p)
    out = out_pad[:n, :o].astype(x.dtype)

    # ---- relation embedding projection: tiny dense matmul, leave to XLA ----
    rel_out = jnp.dot(rel_cat, rel_weight,
                      precision=lax.Precision.HIGHEST).astype(x.dtype)

    # act = identity (module default); dropout skipped (eval-mode identity).
    # TODO(synk): training-mode stochastic dropout (p=0.1) not implemented.
    return out, rel_out


def compgcn_net_forward(node_ids, edge_index, edge_type, params, num_rels):
    ent = jnp.take(params["entity_emb"], node_ids, axis=0)
    rel = params["relation_emb"]
    for layer in ("conv1", "conv2"):
        p = params[layer]
        ent, rel = compgcn_conv(ent, edge_index, edge_type, rel,
                                p["weight"], p["rel_weight"], p["bias"], num_rels)
    return ent, rel


# ---------------------------------------------------------------------------
# reference (numpy, float64, FFT-based)
# ---------------------------------------------------------------------------
def _ref_conv(x, edge_index, edge_type, rel_embed, weight, rel_weight, bias,
              num_rels):
    n = x.shape[0]
    sl = np.arange(n, dtype=edge_index.dtype)
    ei = np.concatenate([edge_index, np.stack([sl, sl])], axis=1)
    et = np.concatenate([edge_type, np.full((n,), num_rels * 2, edge_type.dtype)])
    rel_cat = np.concatenate([rel_embed, np.zeros((1, rel_embed.shape[1]))], axis=0)
    h = x[ei[0]]
    r = rel_cat[et]
    msg = np.fft.ifft(np.conj(np.fft.fft(h, axis=-1)) * np.fft.fft(r, axis=-1),
                      axis=-1).real
    agg = np.zeros_like(x)
    np.add.at(agg, ei[1], msg)
    out = agg @ weight + bias
    return out, rel_cat @ rel_weight


def _ref_net(node_ids, edge_index, edge_type, params, num_rels):
    ent = np.asarray(params["entity_emb"], np.float64)[np.asarray(node_ids)]
    rel = np.asarray(params["relation_emb"], np.float64)
    ei = np.asarray(edge_index)
    et = np.asarray(edge_type)
    for layer in ("conv1", "conv2"):
        p = params[layer]
        ent, rel = _ref_conv(ent, ei, et, rel,
                             np.asarray(p["weight"], np.float64),
                             np.asarray(p["rel_weight"], np.float64),
                             np.asarray(p["bias"], np.float64), num_rels)
    return ent, rel


def _xavier_uniform(key, shape, dtype=jnp.float32):
    fan_in, fan_out = shape
    bound = float(np.sqrt(6.0 / (fan_in + fan_out)))
    return jax.random.uniform(key, shape, dtype, minval=-bound, maxval=bound)


# ---------------------------------------------------------------------------
# test
# ---------------------------------------------------------------------------
if __name__ == "__main__":
    key = jax.random.PRNGKey(0)
    ks = jax.random.split(key, 10)

    num_entities, num_relations, emb_dim = 16, 4, 32
    num_edges = 24

    node_ids = jnp.arange(num_entities, dtype=jnp.int32)
    src = jax.random.randint(ks[0], (num_edges,), 0, num_entities, jnp.int32)
    dst = jax.random.randint(ks[1], (num_edges,), 0, num_entities, jnp.int32)
    edge_index = jnp.stack([src, dst], axis=0)
    edge_type = jax.random.randint(ks[2], (num_edges,), 0, 2 * num_relations,
                                   jnp.int32)

    params = {
        "entity_emb": jax.random.normal(ks[3], (num_entities, emb_dim),
                                        jnp.float32),
        "relation_emb": jax.random.normal(ks[4], (2 * num_relations + 1, emb_dim),
                                          jnp.float32),
        "conv1": {
            "weight": _xavier_uniform(ks[5], (emb_dim, emb_dim)),
            "rel_weight": _xavier_uniform(ks[6], (emb_dim, emb_dim)),
            "bias": 0.1 * jax.random.normal(ks[7], (emb_dim,), jnp.float32),
        },
        "conv2": {
            "weight": _xavier_uniform(ks[8], (emb_dim, emb_dim)),
            "rel_weight": _xavier_uniform(ks[9], (emb_dim, emb_dim)),
            "bias": 0.1 * jax.random.normal(jax.random.fold_in(key, 99),
                                            (emb_dim,), jnp.float32),
        },
    }

    net_fwd = jax.jit(functools.partial(compgcn_net_forward,
                                        num_rels=num_relations))
    ent, rel = net_fwd(node_ids, edge_index, edge_type, params)
    ent = jax.block_until_ready(ent)
    rel = jax.block_until_ready(rel)

    ref_ent, ref_rel = _ref_net(node_ids, edge_index, edge_type, params,
                                num_relations)

    # rel path is pure f32 XLA (Precision.HIGHEST) -> tight check.
    np.testing.assert_allclose(np.asarray(rel, np.float64), ref_rel,
                               rtol=1e-3, atol=1e-4)
    # ent path uses bf16 MXU operands (f32 accumulation) across two stacked
    # conv layers -> scale-normalized max-error check.
    ent64 = np.asarray(ent, np.float64)
    scale = np.max(np.abs(ref_ent)) + 1e-12
    err = np.max(np.abs(ent64 - ref_ent)) / scale
    assert np.isfinite(err) and err < 5e-2, f"ent normalized max error {err:.4f}"

    print("KERNEL_OK")
</pallas_src>

<mosaic_0001>
module attributes {stable_mosaic.version = 11 : i64} {
  func.func @_corr_kernel(%arg0: i32, %arg1: memref<128x128xbf16, #tpu.memory_space<vmem>>, %arg2: memref<128x128xbf16, #tpu.memory_space<vmem>>, %arg3: memref<128x256xbf16, #tpu.memory_space<vmem>>, %arg4: memref<256x128xbf16, #tpu.memory_space<vmem>>, %arg5: memref<128x128xbf16, #tpu.memory_space<vmem>>) attributes {dimension_semantics = [#tpu.dimension_semantics<parallel>], iteration_bounds = array<i64: 1>, scalar_prefetch = 0 : i64, scratch_operands = 0 : i64, tpu.core_type = #tpu.core_type<tc>, window_params = [{transform_indices = @transform_0, window_bounds = array<i64: 128, 128>}, {transform_indices = @transform_1, window_bounds = array<i64: 128, 128>}, {pipeline_mode = #tpu.pipeline_mode<synchronous>, transform_indices = @transform_2, window_bounds = array<i64: 128, 256>}, {pipeline_mode = #tpu.pipeline_mode<synchronous>, transform_indices = @transform_3, window_bounds = array<i64: 256, 128>}, {transform_indices = @transform_4, window_bounds = array<i64: 128, 128>}]} {
    %c0 = arith.constant 0 : index
    %c0_0 = arith.constant 0 : index
    %0 = vector.load %arg1[%c0, %c0_0] : memref<128x128xbf16, #tpu.memory_space<vmem>>, vector<128x128xbf16>
    %c0_1 = arith.constant 0 : index
    %c0_2 = arith.constant 0 : index
    %1 = vector.load %arg3[%c0_1, %c0_2] : memref<128x256xbf16, #tpu.memory_space<vmem>>, vector<128x256xbf16>
    %cst = arith.constant dense<0.000000e+00> : vector<128x256xf32>
    %2 = tpu.matmul %0, %1, %cst {dimension_numbers = #tpu.dot_dimension_numbers<[1], [0], [0], [1], [0, 0, 1, 1], [], []>} : vector<128x128xbf16>, vector<128x256xbf16>, vector<128x256xf32> -> vector<128x256xf32>
    %c0_3 = arith.constant 0 : index
    %c0_4 = arith.constant 0 : index
    %3 = vector.load %arg2[%c0_3, %c0_4] : memref<128x128xbf16, #tpu.memory_space<vmem>>, vector<128x128xbf16>
    %c0_5 = arith.constant 0 : index
    %c0_6 = arith.constant 0 : index
    %4 = vector.load %arg3[%c0_5, %c0_6] : memref<128x256xbf16, #tpu.memory_space<vmem>>, vector<128x256xbf16>
    %cst_7 = arith.constant dense<0.000000e+00> : vector<128x256xf32>
    %5 = tpu.matmul %3, %4, %cst_7 {dimension_numbers = #tpu.dot_dimension_numbers<[1], [0], [0], [1], [0, 0, 1, 1], [], []>} : vector<128x128xbf16>, vector<128x256xbf16>, vector<128x256xf32> -> vector<128x256xf32>
    %6 = vector.extract_strided_slice %2 {offsets = [0, 0], sizes = [128, 128], strides = [1, 1]} : vector<128x256xf32> to vector<128x128xf32>
    %7 = vector.extract_strided_slice %2 {offsets = [0, 128], sizes = [128, 128], strides = [1, 1]} : vector<128x256xf32> to vector<128x128xf32>
    %8 = vector.extract_strided_slice %5 {offsets = [0, 0], sizes = [128, 128], strides = [1, 1]} : vector<128x256xf32> to vector<128x128xf32>
    %9 = vector.extract_strided_slice %5 {offsets = [0, 128], sizes = [128, 128], strides = [1, 1]} : vector<128x256xf32> to vector<128x128xf32>
    %10 = arith.mulf %6, %8 : vector<128x128xf32>
    %11 = arith.mulf %7, %9 : vector<128x128xf32>
    %12 = arith.addf %10, %11 : vector<128x128xf32>
    %13 = arith.mulf %7, %8 : vector<128x128xf32>
    %14 = arith.mulf %6, %9 : vector<128x128xf32>
    %15 = arith.subf %13, %14 : vector<128x128xf32>
    %16 = arith.truncf %12 : vector<128x128xf32> to vector<128x128xbf16>
    %17 = arith.truncf %15 : vector<128x128xf32> to vector<128x128xbf16>
    %18 = tpu.concatenate %16, %17 in 1 : vector<128x128xbf16>, vector<128x128xbf16> -> vector<128x256xbf16>
    %c0_8 = arith.constant 0 : index
    %c0_9 = arith.constant 0 : index
    %19 = vector.load %arg4[%c0_8, %c0_9] : memref<256x128xbf16, #tpu.memory_space<vmem>>, vector<256x128xbf16>
    %cst_10 = arith.constant dense<0.000000e+00> : vector<128x128xf32>
    %20 = tpu.matmul %18, %19, %cst_10 {dimension_numbers = #tpu.dot_dimension_numbers<[1], [0], [0], [1], [0, 0, 1, 1], [], []>} : vector<128x256xbf16>, vector<256x128xbf16>, vector<128x128xf32> -> vector<128x128xf32>
    %21 = arith.truncf %20 : vector<128x128xf32> to vector<128x128xbf16>
    %c0_11 = arith.constant 0 : index
    %c0_12 = arith.constant 0 : index
    %22 = vector.load %arg5[%c0_11, %c0_12] : memref<128x128xbf16, #tpu.memory_space<vmem>>, vector<128x128xbf16>
    tpu.vector_store %arg5[%c0_11, %c0_12], %21 {strides = array<i32>} : memref<128x128xbf16, #tpu.memory_space<vmem>>, vector<128x128xbf16>,
    return
  }
  func.func @transform_0(%arg0: i32) -> (i32, i32) {
    %c0_i32 = arith.constant 0 : i32
    %c0_i32_0 = arith.constant 0 : i32
    return %arg0, %c0_i32 : i32, i32
  }
  func.func @transform_1(%arg0: i32) -> (i32, i32) {
    %c0_i32 = arith.constant 0 : i32
    %c0_i32_0 = arith.constant 0 : i32
    return %arg0, %c0_i32 : i32, i32
  }
  func.func @transform_2(%arg0: i32) -> (i32, i32) {
    %c0_i32 = arith.constant 0 : i32
    %c0_i32_0 = arith.constant 0 : i32
    %c0_i32_1 = arith.constant 0 : i32
    return %c0_i32, %c0_i32_0 : i32, i32
  }
  func.func @transform_3(%arg0: i32) -> (i32, i32) {
    %c0_i32 = arith.constant 0 : i32
    %c0_i32_0 = arith.constant 0 : i32
    %c0_i32_1 = arith.constant 0 : i32
    return %c0_i32, %c0_i32_0 : i32, i32
  }
  func.func @transform_4(%arg0: i32) -> (i32, i32) {
    %c0_i32 = arith.constant 0 : i32
    %c0_i32_0 = arith.constant 0 : i32
    return %arg0, %c0_i32 : i32, i32
  }
}

module attributes {stable_mosaic.version = 11 : i64} {
  func.func @_scatter_project_kernel(%arg0: i32, %arg1: i32, %arg2: memref<1xi32, #tpu.memory_space<smem>>, %arg3: memref<1xi32, #tpu.memory_space<smem>>, %arg4: memref<1x128xi32, #tpu.memory_space<vmem>>, %arg5: memref<128x128xbf16, #tpu.memory_space<vmem>>, %arg6: memref<128x128xbf16, #tpu.memory_space<vmem>>, %arg7: memref<1x128xf32, #tpu.memory_space<vmem>>, %arg8: memref<16x128xf32, #tpu.memory_space<vmem>>, %arg9: memref<16x128xf32, #tpu.memory_space<vmem>>) attributes {dimension_semantics = [#tpu.dimension_semantics<parallel>, #tpu.dimension_semantics<arbitrary>], iteration_bounds = array<i64: 1, 1>, scalar_prefetch = 2 : i64, scratch_operands = 1 : i64, tpu.core_type = #tpu.core_type<tc>, window_params = [{transform_indices = @transform_0, window_bounds = array<i64: 1, 128>}, {transform_indices = @transform_1, window_bounds = array<i64: 128, 128>}, {pipeline_mode = #tpu.pipeline_mode<synchronous>, transform_indices = @transform_2, window_bounds = array<i64: 128, 128>}, {pipeline_mode = #tpu.pipeline_mode<synchronous>, transform_indices = @transform_3, window_bounds = array<i64: 1, 128>}, {transform_indices = @transform_4, window_bounds = array<i64: 16, 128>}]} {
    %c0_i32 = arith.constant 0 : i32
    %0 = arith.cmpi eq, %arg1, %c0_i32 : i32
    %1 = arith.extui %0 : i1 to i32
    %c0_i32_0 = arith.constant 0 : i32
    %2 = arith.cmpi ne, %1, %c0_i32_0 : i32
    scf.if %2 {
      %cst = arith.constant 0.000000e+00 : f32
      %11 = vector.broadcast %cst : f32 to vector<16x128xf32>
      %c0 = arith.constant 0 : index
      %c0_4 = arith.constant 0 : index
      %12 = vector.load %arg9[%c0, %c0_4] : memref<16x128xf32, #tpu.memory_space<vmem>>, vector<16x128xf32>
      tpu.vector_store %arg9[%c0, %c0_4], %11 {strides = array<i32>} : memref<16x128xf32, #tpu.memory_space<vmem>>, vector<16x128xf32>,
    } else {
    }
    %3 = arith.index_cast %arg0 : i32 to index
    %4 = memref.load %arg3[%3] : memref<1xi32, #tpu.memory_space<smem>>
    %5 = arith.cmpi slt, %arg1, %4 : i32
    %6 = arith.extui %5 : i1 to i32
    %c0_i32_1 = arith.constant 0 : i32
    %7 = arith.cmpi ne, %6, %c0_i32_1 : i32
    scf.if %7 {
      %c16_i32 = arith.constant 16 : i32
      %11 = arith.muli %arg0, %c16_i32 : i32
      %12 = tpu.iota {dimensions = array<i32: 0>} : vector<16x128xi32>
      %13 = vector.broadcast %11 : i32 to vector<16x128xi32>
      %14 = arith.addi %13, %12 : vector<16x128xi32>
      %c0 = arith.constant 0 : index
      %c0_4 = arith.constant 0 : index
      %15 = vector.load %arg4[%c0, %c0_4] : memref<1x128xi32, #tpu.memory_space<vmem>>, vector<1x128xi32>
      %16 = vector.broadcast %15 : vector<1x128xi32> to vector<16x128xi32>
      %17 = arith.cmpi eq, %14, %16 : vector<16x128xi32>
      %18 = arith.extui %17 : vector<16x128xi1> to vector<16x128xi32>
      %19 = arith.sitofp %18 : vector<16x128xi32> to vector<16x128xf32>
      %20 = arith.truncf %19 : vector<16x128xf32> to vector<16x128xbf16>
      %c0_5 = arith.constant 0 : index
      %c0_6 = arith.constant 0 : index
      %21 = vector.load %arg9[%c0_5, %c0_6] : memref<16x128xf32, #tpu.memory_space<vmem>>, vector<16x128xf32>
      %c0_7 = arith.constant 0 : index
      %c0_8 = arith.constant 0 : index
      %22 = vector.load %arg5[%c0_7, %c0_8] : memref<128x128xbf16, #tpu.memory_space<vmem>>, vector<128x128xbf16>
      %cst = arith.constant dense<0.000000e+00> : vector<16x128xf32>
      %23 = tpu.matmul %20, %22, %cst {dimension_numbers = #tpu.dot_dimension_numbers<[1], [0], [0], [1], [0, 0, 1, 1], [], []>} : vector<16x128xbf16>, vector<128x128xbf16>, vector<16x128xf32> -> vector<16x128xf32>
      %24 = arith.addf %21, %23 : vector<16x128xf32>
      %c0_9 = arith.constant 0 : index
      %c0_10 = arith.constant 0 : index
      %25 = vector.load %arg9[%c0_9, %c0_10] : memref<16x128xf32, #tpu.memory_space<vmem>>, vector<16x128xf32>
      tpu.vector_store %arg9[%c0_9, %c0_10], %24 {strides = array<i32>} : memref<16x128xf32, #tpu.memory_space<vmem>>, vector<16x128xf32>,
    } else {
    }
    %c0_i32_2 = arith.constant 0 : i32
    %8 = arith.cmpi eq, %arg1, %c0_i32_2 : i32
    %9 = arith.extui %8 : i1 to i32
    %c0_i32_3 = arith.constant 0 : i32
    %10 = arith.cmpi ne, %9, %c0_i32_3 : i32
    scf.if %10 {
      %c0 = arith.constant 0 : index
      %c0_4 = arith.constant 0 : index
      %11 = vector.load %arg9[%c0, %c0_4] : memref<16x128xf32, #tpu.memory_space<vmem>>, vector<16x128xf32>
      %12 = arith.truncf %11 : vector<16x128xf32> to vector<16x128xbf16>
      %c0_5 = arith.constant 0 : index
      %c0_6 = arith.constant 0 : index
      %13 = vector.load %arg6[%c0_5, %c0_6] : memref<128x128xbf16, #tpu.memory_space<vmem>>, vector<128x128xbf16>
      %cst = arith.constant dense<0.000000e+00> : vector<16x128xf32>
      %14 = tpu.matmul %12, %13, %cst {dimension_numbers = #tpu.dot_dimension_numbers<[1], [0], [0], [1], [0, 0, 1, 1], [], []>} : vector<16x128xbf16>, vector<128x128xbf16>, vector<16x128xf32> -> vector<16x128xf32>
      %c0_7 = arith.constant 0 : index
      %c0_8 = arith.constant 0 : index
      %15 = vector.load %arg7[%c0_7, %c0_8] : memref<1x128xf32, #tpu.memory_space<vmem>>, vector<1x128xf32>
      %16 = vector.broadcast %15 : vector<1x128xf32> to vector<16x128xf32>
      %17 = arith.addf %14, %16 : vector<16x128xf32>
      %c0_9 = arith.constant 0 : index
      %c0_10 = arith.constant 0 : index
      %18 = vector.load %arg8[%c0_9, %c0_10] : memref<16x128xf32, #tpu.memory_space<vmem>>, vector<16x128xf32>
      tpu.vector_store %arg8[%c0_9, %c0_10], %17 {strides = array<i32>} : memref<16x128xf32, #tpu.memory_space<vmem>>, vector<16x128xf32>,
    } else {
    }
    return
  }
  func.func @transform_0(%arg0: i32, %arg1: i32, %arg2: memref<1xi32, #tpu.memory_space<smem>>, %arg3: memref<1xi32, #tpu.memory_space<smem>>) -> (i32, i32) {
    %c1_i32 = arith.constant 1 : i32
    %0 = arith.muli %arg0, %c1_i32 : i32
    %1 = arith.addi %0, %arg1 : i32
    %2 = arith.index_cast %1 : i32 to index
    %3 = memref.load %arg2[%2] : memref<1xi32, #tpu.memory_space<smem>>
    %c0_i32 = arith.constant 0 : i32
    %c0_i32_0 = arith.constant 0 : i32
    return %c0_i32, %3 : i32, i32
  }
  func.func @transform_1(%arg0: i32, %arg1: i32, %arg2: memref<1xi32, #tpu.memory_space<smem>>, %arg3: memref<1xi32, #tpu.memory_space<smem>>) -> (i32, i32) {
    %c1_i32 = arith.constant 1 : i32
    %0 = arith.muli %arg0, %c1_i32 : i32
    %1 = arith.addi %0, %arg1 : i32
    %2 = arith.index_cast %1 : i32 to index
    %3 = memref.load %arg2[%2] : memref<1xi32, #tpu.memory_space<smem>>
    %c0_i32 = arith.constant 0 : i32
    %c0_i32_0 = arith.constant 0 : i32
    return %3, %c0_i32 : i32, i32
  }
  func.func @transform_2(%arg0: i32, %arg1: i32, %arg2: memref<1xi32, #tpu.memory_space<smem>>, %arg3: memref<1xi32, #tpu.memory_space<smem>>) -> (i32, i32) {
    %c0_i32 = arith.constant 0 : i32
    %c0_i32_0 = arith.constant 0 : i32
    %c0_i32_1 = arith.constant 0 : i32
    return %c0_i32, %c0_i32_0 : i32, i32
  }
  func.func @transform_3(%arg0: i32, %arg1: i32, %arg2: memref<1xi32, #tpu.memory_space<smem>>, %arg3: memref<1xi32, #tpu.memory_space<smem>>) -> (i32, i32) {
    %c0_i32 = arith.constant 0 : i32
    %c0_i32_0 = arith.constant 0 : i32
    %c0_i32_1 = arith.constant 0 : i32
    return %c0_i32, %c0_i32_0 : i32, i32
  }
  func.func @transform_4(%arg0: i32, %arg1: i32, %arg2: memref<1xi32, #tpu.memory_space<smem>>, %arg3: memref<1xi32, #tpu.memory_space<smem>>) -> (i32, i32) {
    %c0_i32 = arith.constant 0 : i32
    %c0_i32_0 = arith.constant 0 : i32
    return %arg0, %c0_i32 : i32, i32
  }
}

module attributes {stable_mosaic.version = 11 : i64} {
  func.func @_scatter_project_kernel(%arg0: i32, %arg1: i32, %arg2: memref<1xi32, #tpu.memory_space<smem>>, %arg3: memref<1xi32, #tpu.memory_space<smem>>, %arg4: memref<1x128xi32, #tpu.memory_space<vmem>>, %arg5: memref<128x128xbf16, #tpu.memory_space<vmem>>, %arg6: memref<128x128xbf16, #tpu.memory_space<vmem>>, %arg7: memref<1x128xf32, #tpu.memory_space<vmem>>, %arg8: memref<16x128xf32, #tpu.memory_space<vmem>>, %arg9: memref<16x128xf32, #tpu.memory_space<vmem>>) attributes {dimension_semantics = [#tpu.dimension_semantics<parallel>, #tpu.dimension_semantics<arbitrary>], iteration_bounds = array<i64: 1, 1>, scalar_prefetch = 2 : i64, scratch_operands = 1 : i64, tpu.core_type = #tpu.core_type<tc>, window_params = [{transform_indices = @transform_0, window_bounds = array<i64: 1, 128>}, {transform_indices = @transform_1, window_bounds = array<i64: 128, 128>}, {pipeline_mode = #tpu.pipeline_mode<synchronous>, transform_indices = @transform_2, window_bounds = array<i64: 128, 128>}, {pipeline_mode = #tpu.pipeline_mode<synchronous>, transform_indices = @transform_3, window_bounds = array<i64: 1, 128>}, {transform_indices = @transform_4, window_bounds = array<i64: 16, 128>}]} {
    %c0_i32 = arith.constant 0 : i32
    %0 = arith.cmpi eq, %arg1, %c0_i32 : i32
    %1 = arith.extui %0 : i1 to i32
    %c0_i32_0 = arith.constant 0 : i32
    %2 = arith.cmpi ne, %1, %c0_i32_0 : i32
    scf.if %2 {
      %cst = arith.constant 0.000000e+00 : f32
      %11 = vector.broadcast %cst : f32 to vector<16x128xf32>
      %c0 = arith.constant 0 : index
      %c0_4 = arith.constant 0 : index
      %12 = vector.load %arg9[%c0, %c0_4] : memref<16x128xf32, #tpu.memory_space<vmem>>, vector<16x128xf32>
      tpu.vector_store %arg9[%c0, %c0_4], %11 {strides = array<i32>} : memref<16x128xf32, #tpu.memory_space<vmem>>, vector<16x128xf32>,
    } else {
    }
    %3 = arith.index_cast %arg0 : i32 to index
    %4 = memref.load %arg3[%3] : memref<1xi32, #tpu.memory_space<smem>>
    %5 = arith.cmpi slt, %arg1, %4 : i32
    %6 = arith.extui %5 : i1 to i32
    %c0_i32_1 = arith.constant 0 : i32
    %7 = arith.cmpi ne, %6, %c0_i32_1 : i32
    scf.if %7 {
      %c16_i32 = arith.constant 16 : i32
      %11 = arith.muli %arg0, %c16_i32 : i32
      %12 = tpu.iota {dimensions = array<i32: 0>} : vector<16x128xi32>
      %13 = vector.broadcast %11 : i32 to vector<16x128xi32>
      %14 = arith.addi %13, %12 : vector<16x128xi32>
      %c0 = arith.constant 0 : index
      %c0_4 = arith.constant 0 : index
      %15 = vector.load %arg4[%c0, %c0_4] : memref<1x128xi32, #tpu.memory_space<vmem>>, vector<1x128xi32>
      %16 = vector.broadcast %15 : vector<1x128xi32> to vector<16x128xi32>
      %17 = arith.cmpi eq, %14, %16 : vector<16x128xi32>
      %18 = arith.extui %17 : vector<16x128xi1> to vector<16x128xi32>
      %19 = arith.sitofp %18 : vector<16x128xi32> to vector<16x128xf32>
      %20 = arith.truncf %19 : vector<16x128xf32> to vector<16x128xbf16>
      %c0_5 = arith.constant 0 : index
      %c0_6 = arith.constant 0 : index
      %21 = vector.load %arg9[%c0_5, %c0_6] : memref<16x128xf32, #tpu.memory_space<vmem>>, vector<16x128xf32>
      %c0_7 = arith.constant 0 : index
      %c0_8 = arith.constant 0 : index
      %22 = vector.load %arg5[%c0_7, %c0_8] : memref<128x128xbf16, #tpu.memory_space<vmem>>, vector<128x128xbf16>
      %cst = arith.constant dense<0.000000e+00> : vector<16x128xf32>
      %23 = tpu.matmul %20, %22, %cst {dimension_numbers = #tpu.dot_dimension_numbers<[1], [0], [0], [1], [0, 0, 1, 1], [], []>} : vector<16x128xbf16>, vector<128x128xbf16>, vector<16x128xf32> -> vector<16x128xf32>
      %24 = arith.addf %21, %23 : vector<16x128xf32>
      %c0_9 = arith.constant 0 : index
      %c0_10 = arith.constant 0 : index
      %25 = vector.load %arg9[%c0_9, %c0_10] : memref<16x128xf32, #tpu.memory_space<vmem>>, vector<16x128xf32>
      tpu.vector_store %arg9[%c0_9, %c0_10], %24 {strides = array<i32>} : memref<16x128xf32, #tpu.memory_space<vmem>>, vector<16x128xf32>,
    } else {
    }
    %c0_i32_2 = arith.constant 0 : i32
    %8 = arith.cmpi eq, %arg1, %c0_i32_2 : i32
    %9 = arith.extui %8 : i1 to i32
    %c0_i32_3 = arith.constant 0 : i32
    %10 = arith.cmpi ne, %9, %c0_i32_3 : i32
    scf.if %10 {
      %c0 = arith.constant 0 : index
      %c0_4 = arith.constant 0 : index
      %11 = vector.load %arg9[%c0, %c0_4] : memref<16x128xf32, #tpu.memory_space<vmem>>, vector<16x128xf32>
      %12 = arith.truncf %11 : vector<16x128xf32> to vector<16x128xbf16>
      %c0_5 = arith.constant 0 : index
      %c0_6 = arith.constant 0 : index
      %13 = vector.load %arg6[%c0_5, %c0_6] : memref<128x128xbf16, #tpu.memory_space<vmem>>, vector<128x128xbf16>
      %cst = arith.constant dense<0.000000e+00> : vector<16x128xf32>
      %14 = tpu.matmul %12, %13, %cst {dimension_numbers = #tpu.dot_dimension_numbers<[1], [0], [0], [1], [0, 0, 1, 1], [], []>} : vector<16x128xbf16>, vector<128x128xbf16>, vector<16x128xf32> -> vector<16x128xf32>
      %c0_7 = arith.constant 0 : index
      %c0_8 = arith.constant 0 : index
      %15 = vector.load %arg7[%c0_7, %c0_8] : memref<1x128xf32, #tpu.memory_space<vmem>>, vector<1x128xf32>
      %16 = vector.broadcast %15 : vector<1x128xf32> to vector<16x128xf32>
      %17 = arith.addf %14, %16 : vector<16x128xf32>
      %c0_9 = arith.constant 0 : index
      %c0_10 = arith.constant 0 : index
      %18 = vector.load %arg8[%c0_9, %c0_10] : memref<16x128xf32, #tpu.memory_space<vmem>>, vector<16x128xf32>
      tpu.vector_store %arg8[%c0_9, %c0_10], %17 {strides = array<i32>} : memref<16x128xf32, #tpu.memory_space<vmem>>, vector<16x128xf32>,
    } else {
    }
    return
  }
  func.func @transform_0(%arg0: i32, %arg1: i32, %arg2: memref<1xi32, #tpu.memory_space<smem>>, %arg3: memref<1xi32, #tpu.memory_space<smem>>) -> (i32, i32) {
    %c1_i32 = arith.constant 1 : i32
    %0 = arith.muli %arg0, %c1_i32 : i32
    %1 = arith.addi %0, %arg1 : i32
    %2 = arith.index_cast %1 : i32 to index
    %3 = memref.load %arg2[%2] : memref<1xi32, #tpu.memory_space<smem>>
    %c0_i32 = arith.constant 0 : i32
    %c0_i32_0 = arith.constant 0 : i32
    return %c0_i32, %3 : i32, i32
  }
  func.func @transform_1(%arg0: i32, %arg1: i32, %arg2: memref<1xi32, #tpu.memory_space<smem>>, %arg3: memref<1xi32, #tpu.memory_space<smem>>) -> (i32, i32) {
    %c1_i32 = arith.constant 1 : i32
    %0 = arith.muli %arg0, %c1_i32 : i32
    %1 = arith.addi %0, %arg1 : i32
    %2 = arith.index_cast %1 : i32 to index
    %3 = memref.load %arg2[%2] : memref<1xi32, #tpu.memory_space<smem>>
    %c0_i32 = arith.constant 0 : i32
    %c0_i32_0 = arith.constant 0 : i32
    return %3, %c0_i32 : i32, i32
  }
  func.func @transform_2(%arg0: i32, %arg1: i32, %arg2: memref<1xi32, #tpu.memory_space<smem>>, %arg3: memref<1xi32, #tpu.memory_space<smem>>) -> (i32, i32) {
    %c0_i32 = arith.constant 0 : i32
    %c0_i32_0 = arith.constant 0 : i32
    %c0_i32_1 = arith.constant 0 : i32
    return %c0_i32, %c0_i32_0 : i32, i32
  }
  func.func @transform_3(%arg0: i32, %arg1: i32, %arg2: memref<1xi32, #tpu.memory_space<smem>>, %arg3: memref<1xi32, #tpu.memory_space<smem>>) -> (i32, i32) {
    %c0_i32 = arith.constant 0 : i32
    %c0_i32_0 = arith.constant 0 : i32
    %c0_i32_1 = arith.constant 0 : i32
    return %c0_i32, %c0_i32_0 : i32, i32
  }
  func.func @transform_4(%arg0: i32, %arg1: i32, %arg2: memref<1xi32, #tpu.memory_space<smem>>, %arg3: memref<1xi32, #tpu.memory_space<smem>>) -> (i32, i32) {
    %c0_i32 = arith.constant 0 : i32
    %c0_i32_0 = arith.constant 0 : i32
    return %arg0, %c0_i32 : i32, i32
  }
}

</mosaic_0001>

<llo_original>
// kernel: custom-call
$region0: #{custom-call}
  %s0 = inlined_call_operand.vmem [shape: u32[2], index: 0, kind: output, shape index: {}]

// kernel: compgcn_net_forward.5
$region0: #{compgcn_net_forward.5}
  #allocation0 [shape = 'u32[]', space=smem, size = 0x4, offset = 0x4, fixed_abs, tag = 'smem constant byte address 0x4 - core index']
  #allocation1 [shape = 'u32[72,128]{1,0:T(1,128)}', space=vmem, size = 0x9000, scoped, tag = 'internal scratch']
  #allocation2 [shape = 'f32[16,128]{1,0:T(8,128)}', space=vmem, size = 0x2000, scoped, tag = 'scratch operand']
  #allocation3 [shape = 's32[1]{0}', space=sflag, size = 0x4, scoped, tag = 'scoped memory for compgcn_net_forward.5']
  #allocation4 [shape = 's32[1]{0:T(128)S(6)}', space=smem, size = 0x200, scoped, tag = 'prefetched SMEM operand 0']
  #allocation5 [shape = 's32[1]{0:T(128)S(6)}', space=smem, size = 0x200, scoped, tag = 'prefetched SMEM operand 1']
  %s0 = inlined_call_operand.<no memory space> [shape: s32[1], index: 0, kind: input, shape index: {}]
  %s1 = inlined_call_operand.<no memory space> [shape: s32[1], index: 1, kind: input, shape index: {}]
  %s2 = inlined_call_operand.vmem [shape: s32[1,128], index: 2, kind: input, shape index: {}]
  %s3 = inlined_call_operand.vmem [shape: bf16[128,128], index: 3, kind: input, shape index: {}]
  %s4 = inlined_call_operand.vmem [shape: bf16[128,128], index: 4, kind: input, shape index: {}]
  %s5 = inlined_call_operand.vmem [shape: f32[1,128], index: 5, kind: input, shape index: {}]
  %s6 = inlined_call_operand.vmem [shape: f32[16,128], index: 6, kind: output, shape index: {}]
  %s7 = sld [smem:[#allocation0]]
  $region38: #{compgcn_net_forward.5} parent=0
    _
  %s9 = ssub.s32 1, %s7
  %s10 = scalar_select 0, %s9, %s7
  %11 = sst [smem:[#allocation4]] %s0
  %12 = sst [smem:[#allocation5]] %s1
  // Predicated region
  $region2: #{compgcn_net_forward.5} parent=0 // pred_check
    _
  $region3: #{compgcn_net_forward.5} parent=0 // pred_check_branch
    %14 = sbr.rel (0) target = $region5
  $region4: #{compgcn_net_forward.5} parent=0 // pred_region
    %s15 = sadd.s32 0, 0
    %s16 = sld [smem:[#allocation4 + %s15]]
    %p17 = scmp.lt.s32.totalorder %s16, 0
    %s18 = scalar_select %p17, %s16, 0
    %s19 = scalar_lea.vmem %s2, %s18
    %s20 = sadd.s32 0, 0
    %s21 = sld [smem:[#allocation4 + %s20]]
  $region5: #{compgcn_net_forward.5} parent=0 // pred_fallthru
    _
  // Predicated region
  $region6: #{compgcn_net_forward.5} parent=0 // pred_check
    _
  $region7: #{compgcn_net_forward.5} parent=0 // pred_check_branch
    %23 = sbr.rel (0) target = $region9
  $region8: #{compgcn_net_forward.5} parent=0 // pred_region
    %s24 = sadd.s32 0, 0
    %s25 = sld [smem:[#allocation4 + %s24]]
    %s26 = smul.u32 16, %s25
    %p27 = scmp.lt.s32.totalorder %s26, 15
    %s28 = scalar_select %p27, %s26, 15
    %s29 = smul.addr %s28, 4
    %s30 = scalar_lea.vmem %s3, %s29
    %s31 = sadd.s32 0, 0
    %s32 = sld [smem:[#allocation4 + %s31]]
    %s33 = smul.u32 16, %s32
  $region9: #{compgcn_net_forward.5} parent=0 // pred_fallthru
    _
  // Predicated region
  $region10: #{compgcn_net_forward.5} parent=0 // pred_check
    _
  $region11: #{compgcn_net_forward.5} parent=0 // pred_check_branch
    %35 = sbr.rel (0) target = $region13
  $region12: #{compgcn_net_forward.5} parent=0 // pred_region
    _
  $region13: #{compgcn_net_forward.5} parent=0 // pred_fallthru
    _
  // Predicated region
  $region14: #{compgcn_net_forward.5} parent=0 // pred_check
    _
  $region15: #{compgcn_net_forward.5} parent=0 // pred_check_branch
    %37 = sbr.rel (0) target = $region17
  $region16: #{compgcn_net_forward.5} parent=0 // pred_region
    _
  $region17: #{compgcn_net_forward.5} parent=0 // pred_fallthru
    _
  %s38 = sadd.s32 0, 0
  %s39 = sld [smem:[#allocation4 + %s38]]
  %p40 = scmp.lt.s32.totalorder %s39, 0
  %s41 = scalar_select %p40, %s39, 0
  %s42 = scalar_lea.vmem %s2, %s41
  %s43 = sadd.s32 0, 0
  %s44 = sld [smem:[#allocation4 + %s43]]
  %s45 = smul.u32 16, %s44
  %p46 = scmp.lt.s32.totalorder %s45, 15
  %s47 = scalar_select %p46, %s45, 15
  %s48 = smul.addr %s47, 4
  %s49 = scalar_lea.vmem %s3, %s48
  %s50 = sadd.s32 0, 0
  %s51 = sld [smem:[#allocation4 + %s50]]
  %p52 = scmp.lt.s32.totalorder %s51, 0
  %s53 = scalar_select %p52, %s51, 0
  %s54 = scalar_lea.vmem %s2, %s53
  %s55 = sadd.s32 0, 0
  %s56 = sld [smem:[#allocation4 + %s55]]
  %s57 = sadd.s32 0, 0
  %s58 = sld [smem:[#allocation4 + %s57]]
  %s59 = smul.u32 16, %s58
  %p60 = scmp.lt.s32.totalorder %s59, 15
  %s61 = scalar_select %p60, %s59, 15
  %s62 = smul.addr %s61, 4
  %s63 = scalar_lea.vmem %s3, %s62
  %s64 = sadd.s32 0, 0
  %s65 = sld [smem:[#allocation4 + %s64]]
  %s66 = smul.u32 16, %s65
  %p67 = scmp.eq.s32.totalorder 0, 0
  // Predicated region
  $region18: #{compgcn_net_forward.5} parent=0 // pred_check
    %p68 = pneg %p67
  $region19: #{compgcn_net_forward.5} parent=0 // pred_check_branch
    %70 = sbr.rel (%p68) target = $region21
  $region20: #{compgcn_net_forward.5} parent=0 // pred_region
    %71 = vst [vmem:[#allocation2] sm:$0xff] 0.0
    %72 = vst [vmem:[#allocation2 + $0x8] sm:$0xff] 0.0
  $region21: #{compgcn_net_forward.5} parent=0 // pred_fallthru
    _
  %s73 = sld [smem:[#allocation5]]
  %p74 = scmp.lt.s32.totalorder 0, %s73
  // Predicated region
  $region22: #{compgcn_net_forward.5} parent=0 // pred_check
    %p75 = pneg %p74
  $region23: #{compgcn_net_forward.5} parent=0 // pred_check_branch
    %77 = sbr.rel (%p75) target = $region25
  $region24: #{compgcn_net_forward.5} parent=0 // pred_region
    %s78 = smul.u32 0, 16
    %v79 = vlaneseq
    %v80 = vshrl.u32 %v79, 7
    %v81 = vadd.s32 %v80, 8
    %v82 = vstv %s78
    %v83 = vadd.s32 %v82, %v80
    %v84 = vadd.s32 %v82, %v81
    %v85 = vld [vmem:[%s54] sm:$0x1]
    %v86 = vperm.slane %v85, 0
    %vm87 = vcmp.eq.s32.totalorder %v83, %v86
    %vm88 = vcmp.eq.s32.totalorder %v84, %v86
    %v89 = vsel %vm87, 1, 0
    %v90 = vsel %vm88, 1, 0
    %v91 = vcvt.s32.f32 %v89
    %v92 = vcvt.s32.f32 %v90
    %v93 = vpack.c.bf16 %v92, %v91
    %v94 = vld [vmem:[#allocation2] sm:$0xff]
    %v95 = vld [vmem:[#allocation2 + $0x8] sm:$0xff]
    %v96 = vld [vmem:[%s63] sm:$0xf]
    %v97 = vld [vmem:[%s63 + $0x4] sm:$0xf]
    %v98 = vld [vmem:[%s63 + $0x8] sm:$0xf]
    %v99 = vld [vmem:[%s63 + $0xc] sm:$0xf]
    %v100 = vld [vmem:[%s63 + $0x10] sm:$0xf]
    %v101 = vld [vmem:[%s63 + $0x14] sm:$0xf]
    %v102 = vld [vmem:[%s63 + $0x18] sm:$0xf]
    %v103 = vld [vmem:[%s63 + $0x1c] sm:$0xf]
    %v104 = vld [vmem:[%s63 + $0x20] sm:$0xf]
    %v105 = vld [vmem:[%s63 + $0x24] sm:$0xf]
    %v106 = vld [vmem:[%s63 + $0x28] sm:$0xf]
    %v107 = vld [vmem:[%s63 + $0x2c] sm:$0xf]
    %v108 = vld [vmem:[%s63 + $0x30] sm:$0xf]
    %v109 = vld [vmem:[%s63 + $0x34] sm:$0xf]
    %v110 = vld [vmem:[%s63 + $0x38] sm:$0xf]
    %v111 = vld [vmem:[%s63 + $0x3c] sm:$0xf]
    %v128 = vunpack.c.l.b16 %v96
    %v129 = vunpack.c.l.b16 %v97
    %v130 = vunpack.c.l.b16 %v98
    %v131 = vunpack.c.l.b16 %v99
    %v132 = vunpack.c.l.b16 %v100
    %v133 = vunpack.c.l.b16 %v101
    %v134 = vunpack.c.l.b16 %v102
    %v135 = vunpack.c.l.b16 %v103
    %v136 = vunpack.c.l.b16 %v104
    %v137 = vunpack.c.l.b16 %v105
    %v138 = vunpack.c.l.b16 %v106
    %v139 = vunpack.c.l.b16 %v107
    %v140 = vunpack.c.l.b16 %v108
    %v141 = vunpack.c.l.b16 %v109
    %v142 = vunpack.c.l.b16 %v110
    %v143 = vunpack.c.l.b16 %v111
    %v144 = vpack.c.b16 %v129, %v128
    %v145 = vpack.c.b16 %v131, %v130
    %v146 = vpack.c.b16 %v133, %v132
    %v147 = vpack.c.b16 %v135, %v134
    %v148 = vpack.c.b16 %v137, %v136
    %v149 = vpack.c.b16 %v139, %v138
    %v150 = vpack.c.b16 %v141, %v140
    %v151 = vpack.c.b16 %v143, %v142
    %160 = vmatpush.bf16.msra.mxu0 %v151
    %161 = vmatpush.bf16.msra.mxu0 %v150
    %162 = vmatpush.bf16.msra.mxu0 %v149
    %163 = vmatpush.bf16.msra.mxu0 %v148
    %164 = vmatpush.bf16.msra.mxu0 %v147
    %165 = vmatpush.bf16.msra.mxu0 %v146
    %166 = vmatpush.bf16.msra.mxu0 %v145
    %167 = vmatpush.bf16.msra.mxu0 %v144
    %168 = vmatmul.bf16.gmra.mxu0 %v93
    %v169 = vpop.f32.mrf.mxu0
    %v170 = vadd.f32 0.0, %v169
    %v171 = vpop.f32.mrf.mxu0
    %v172 = vadd.f32 0.0, %v171
    %173 = vdwg.mxu0
    %v174 = vadd.f32 %v94, %v170
    %v175 = vadd.f32 %v95, %v172
    %176 = vst [vmem:[#allocation2] sm:$0xff] %v174
    %177 = vst [vmem:[#allocation2 + $0x8] sm:$0xff] %v175
  $region25: #{compgcn_net_forward.5} parent=0 // pred_fallthru
    _
  // Predicated region
  $region26: #{compgcn_net_forward.5} parent=0 // pred_check
    %p178 = pneg %p67
  $region27: #{compgcn_net_forward.5} parent=0 // pred_check_branch
    %180 = sbr.rel (%p178) target = $region29
  $region28: #{compgcn_net_forward.5} parent=0 // pred_region
    %v181 = vld [vmem:[#allocation2] sm:$0xff]
    %v182 = vld [vmem:[#allocation2 + $0x8] sm:$0xff]
    %v183 = vpack.c.bf16 %v182, %v181
    %v184 = vld [vmem:[%s4] sm:$0xf]
    %v185 = vld [vmem:[%s4 + $0x4] sm:$0xf]
    %v186 = vld [vmem:[%s4 + $0x8] sm:$0xf]
    %v187 = vld [vmem:[%s4 + $0xc] sm:$0xf]
    %v188 = vld [vmem:[%s4 + $0x10] sm:$0xf]
    %v189 = vld [vmem:[%s4 + $0x14] sm:$0xf]
    %v190 = vld [vmem:[%s4 + $0x18] sm:$0xf]
    %v191 = vld [vmem:[%s4 + $0x1c] sm:$0xf]
    %v192 = vld [vmem:[%s4 + $0x20] sm:$0xf]
    %v193 = vld [vmem:[%s4 + $0x24] sm:$0xf]
    %v194 = vld [vmem:[%s4 + $0x28] sm:$0xf]
    %v195 = vld [vmem:[%s4 + $0x2c] sm:$0xf]
    %v196 = vld [vmem:[%s4 + $0x30] sm:$0xf]
    %v197 = vld [vmem:[%s4 + $0x34] sm:$0xf]
    %v198 = vld [vmem:[%s4 + $0x38] sm:$0xf]
    %v199 = vld [vmem:[%s4 + $0x3c] sm:$0xf]
    %v200 = vld [vmem:[%s5] sm:$0x1]
    %v202 = vperm.slane %v200, 0
    %v220 = vunpack.c.l.b16 %v184
    %v221 = vunpack.c.l.b16 %v185
    %v222 = vunpack.c.l.b16 %v186
    %v223 = vunpack.c.l.b16 %v187
    %v224 = vunpack.c.l.b16 %v188
    %v225 = vunpack.c.l.b16 %v189
    %v226 = vunpack.c.l.b16 %v190
    %v227 = vunpack.c.l.b16 %v191
    %v228 = vunpack.c.l.b16 %v192
    %v229 = vunpack.c.l.b16 %v193
    %v230 = vunpack.c.l.b16 %v194
    %v231 = vunpack.c.l.b16 %v195
    %v232 = vunpack.c.l.b16 %v196
    %v233 = vunpack.c.l.b16 %v197
    %v234 = vunpack.c.l.b16 %v198
    %v235 = vunpack.c.l.b16 %v199
    %v236 = vpack.c.b16 %v221, %v220
    %v237 = vpack.c.b16 %v223, %v222
    %v238 = vpack.c.b16 %v225, %v224
    %v239 = vpack.c.b16 %v227, %v226
    %v240 = vpack.c.b16 %v229, %v228
    %v241 = vpack.c.b16 %v231, %v230
    %v242 = vpack.c.b16 %v233, %v232
    %v243 = vpack.c.b16 %v235, %v234
    %252 = vmatpush.bf16.msra.mxu0 %v243
    %253 = vmatpush.bf16.msra.mxu0 %v242
    %254 = vmatpush.bf16.msra.mxu0 %v241
    %255 = vmatpush.bf16.msra.mxu0 %v240
    %256 = vmatpush.bf16.msra.mxu0 %v239
    %257 = vmatpush.bf16.msra.mxu0 %v238
    %258 = vmatpush.bf16.msra.mxu0 %v237
    %259 = vmatpush.bf16.msra.mxu0 %v236
    %260 = vmatmul.bf16.gmra.mxu0 %v183
    %v261 = vpop.f32.mrf.mxu0
    %v262 = vadd.f32 %v202, %v261
    %v263 = vpop.f32.mrf.mxu0
    %v264 = vadd.f32 %v202, %v263
    %265 = vdwg.mxu0
    %266 = vst [vmem:[%s6] sm:$0xff] %v262
    %267 = vst [vmem:[%s6 + $0x8] sm:$0xff] %v264
  $region29: #{compgcn_net_forward.5} parent=0 // pred_fallthru
    _
  // Predicated region
  $region30: #{compgcn_net_forward.5} parent=0 // pred_check
    _
  $region31: #{compgcn_net_forward.5} parent=0 // pred_check_branch
    %269 = sbr.rel (0) target = $region33
  $region32: #{compgcn_net_forward.5} parent=0 // pred_region
    _
  $region33: #{compgcn_net_forward.5} parent=0 // pred_fallthru
    _
  // Predicated region
  $region34: #{compgcn_net_forward.5} parent=0 // pred_check
    _
  $region35: #{compgcn_net_forward.5} parent=0 // pred_check_branch
    %271 = sbr.rel (0) target = $region37
  $region36: #{compgcn_net_forward.5} parent=0 // pred_region
    _
  $region37: #{compgcn_net_forward.5} parent=0 // pred_fallthru
    _

// kernel: compgcn_net_forward.4
$region0: #{compgcn_net_forward.4}
  #allocation0 [shape = 'u32[]', space=smem, size = 0x4, offset = 0x4, fixed_abs, tag = 'smem constant byte address 0x4 - core index']
  #allocation1 [shape = 'u32[72,128]{1,0:T(1,128)}', space=vmem, size = 0x9000, scoped, tag = 'internal scratch']
  %s0 = inlined_call_operand.vmem [shape: bf16[128,128], index: 0, kind: input, shape index: {}]
  %s1 = inlined_call_operand.vmem [shape: bf16[128,128], index: 1, kind: input, shape index: {}]
  %s2 = inlined_call_operand.vmem [shape: bf16[128,256], index: 2, kind: input, shape index: {}]
  %s3 = inlined_call_operand.vmem [shape: bf16[256,128], index: 3, kind: input, shape index: {}]
  %s4 = inlined_call_operand.vmem [shape: bf16[128,128], index: 4, kind: output, shape index: {}]
  %s5 = sld [smem:[#allocation0]]
  $region26: #{compgcn_net_forward.4} parent=0
    _
  %s7 = ssub.s32 1, %s5
  %s8 = scalar_select 0, %s7, %s5
  // Predicated region
  $region2: #{compgcn_net_forward.4} parent=0 // pred_check
    _
  $region3: #{compgcn_net_forward.4} parent=0 // pred_check_branch
    %10 = sbr.rel (0) target = $region5
  $region4: #{compgcn_net_forward.4} parent=0 // pred_region
    _
  $region5: #{compgcn_net_forward.4} parent=0 // pred_fallthru
    _
  // Predicated region
  $region6: #{compgcn_net_forward.4} parent=0 // pred_check
    _
  $region7: #{compgcn_net_forward.4} parent=0 // pred_check_branch
    %12 = sbr.rel (0) target = $region9
  $region8: #{compgcn_net_forward.4} parent=0 // pred_region
    _
  $region9: #{compgcn_net_forward.4} parent=0 // pred_fallthru
    _
  // Predicated region
  $region10: #{compgcn_net_forward.4} parent=0 // pred_check
    _
  $region11: #{compgcn_net_forward.4} parent=0 // pred_check_branch
    %14 = sbr.rel (0) target = $region13
  $region12: #{compgcn_net_forward.4} parent=0 // pred_region
    _
  $region13: #{compgcn_net_forward.4} parent=0 // pred_fallthru
    _
  // Predicated region
  $region14: #{compgcn_net_forward.4} parent=0 // pred_check
    _
  $region15: #{compgcn_net_forward.4} parent=0 // pred_check_branch
    %16 = sbr.rel (0) target = $region17
  $region16: #{compgcn_net_forward.4} parent=0 // pred_region
    _
  $region17: #{compgcn_net_forward.4} parent=0 // pred_fallthru
    _
  %v17 = vld [vmem:[%s0] sm:$0xf]
  %v18 = vld [vmem:[%s0 + $0x4] sm:$0xf]
  %v19 = vld [vmem:[%s0 + $0x8] sm:$0xf]
  %v20 = vld [vmem:[%s0 + $0xc] sm:$0xf]
  %v21 = vld [vmem:[%s0 + $0x10] sm:$0xf]
  %v22 = vld [vmem:[%s0 + $0x14] sm:$0xf]
  %v23 = vld [vmem:[%s0 + $0x18] sm:$0xf]
  %v24 = vld [vmem:[%s0 + $0x1c] sm:$0xf]
  %v25 = vld [vmem:[%s0 + $0x20] sm:$0xf]
  %v26 = vld [vmem:[%s0 + $0x24] sm:$0xf]
  %v27 = vld [vmem:[%s0 + $0x28] sm:$0xf]
  %v28 = vld [vmem:[%s0 + $0x2c] sm:$0xf]
  %v29 = vld [vmem:[%s0 + $0x30] sm:$0xf]
  %v30 = vld [vmem:[%s0 + $0x34] sm:$0xf]
  %v31 = vld [vmem:[%s0 + $0x38] sm:$0xf]
  %v32 = vld [vmem:[%s0 + $0x3c] sm:$0xf]
  %v33 = vld [vmem:[%s2] sm:$0xff]
  %v34 = vld [vmem:[%s2 + $0x8] sm:$0xff]
  %v35 = vld [vmem:[%s2 + $0x10] sm:$0xff]
  %v36 = vld [vmem:[%s2 + $0x18] sm:$0xff]
  %v37 = vld [vmem:[%s2 + $0x20] sm:$0xff]
  %v38 = vld [vmem:[%s2 + $0x28] sm:$0xff]
  %v39 = vld [vmem:[%s2 + $0x30] sm:$0xff]
  %v40 = vld [vmem:[%s2 + $0x38] sm:$0xff]
  %v41 = vld [vmem:[%s2 + $0x40] sm:$0xff]
  %v42 = vld [vmem:[%s2 + $0x48] sm:$0xff]
  %v43 = vld [vmem:[%s2 + $0x50] sm:$0xff]
  %v44 = vld [vmem:[%s2 + $0x58] sm:$0xff]
  %v45 = vld [vmem:[%s2 + $0x60] sm:$0xff]
  %v46 = vld [vmem:[%s2 + $0x68] sm:$0xff]
  %v47 = vld [vmem:[%s2 + $0x70] sm:$0xff]
  %v48 = vld [vmem:[%s2 + $0x78] sm:$0xff]
  %v65 = vunpack.c.l.b16 %v17
  %v66 = vunpack.c.l.b16 %v18
  %v67 = vunpack.c.l.b16 %v19
  %v68 = vunpack.c.l.b16 %v20
  %v69 = vunpack.c.l.b16 %v21
  %v70 = vunpack.c.l.b16 %v22
  %v71 = vunpack.c.l.b16 %v23
  %v72 = vunpack.c.l.b16 %v24
  %v73 = vunpack.c.l.b16 %v25
  %v74 = vunpack.c.l.b16 %v26
  %v75 = vunpack.c.l.b16 %v27
  %v76 = vunpack.c.l.b16 %v28
  %v77 = vunpack.c.l.b16 %v29
  %v78 = vunpack.c.l.b16 %v30
  %v79 = vunpack.c.l.b16 %v31
  %v80 = vunpack.c.l.b16 %v32
  %v81 = vpack.c.b16 %v66, %v65
  %v82 = vpack.c.b16 %v68, %v67
  %v83 = vpack.c.b16 %v70, %v69
  %v84 = vpack.c.b16 %v72, %v71
  %v85 = vpack.c.b16 %v74, %v73
  %v86 = vpack.c.b16 %v76, %v75
  %v87 = vpack.c.b16 %v78, %v77
  %v88 = vpack.c.b16 %v80, %v79
  %v113 = vunpack.c.l.b16 %v33
  %v114 = vunpack.c.h.b16 %v33
  %v115 = vunpack.c.l.b16 %v34
  %v116 = vunpack.c.h.b16 %v34
  %v117 = vunpack.c.l.b16 %v35
  %v118 = vunpack.c.h.b16 %v35
  %v119 = vunpack.c.l.b16 %v36
  %v120 = vunpack.c.h.b16 %v36
  %v121 = vunpack.c.l.b16 %v37
  %v122 = vunpack.c.h.b16 %v37
  %v123 = vunpack.c.l.b16 %v38
  %v124 = vunpack.c.h.b16 %v38
  %v125 = vunpack.c.l.b16 %v39
  %v126 = vunpack.c.h.b16 %v39
  %v127 = vunpack.c.l.b16 %v40
  %v128 = vunpack.c.h.b16 %v40
  %v129 = vunpack.c.l.b16 %v41
  %v130 = vunpack.c.h.b16 %v41
  %v131 = vunpack.c.l.b16 %v42
  %v132 = vunpack.c.h.b16 %v42
  %v133 = vunpack.c.l.b16 %v43
  %v134 = vunpack.c.h.b16 %v43
  %v135 = vunpack.c.l.b16 %v44
  %v136 = vunpack.c.h.b16 %v44
  %v137 = vunpack.c.l.b16 %v45
  %v138 = vunpack.c.h.b16 %v45
  %v139 = vunpack.c.l.b16 %v46
  %v140 = vunpack.c.h.b16 %v46
  %v141 = vunpack.c.l.b16 %v47
  %v142 = vunpack.c.h.b16 %v47
  %v143 = vunpack.c.l.b16 %v48
  %v144 = vunpack.c.h.b16 %v48
  %v145 = vpack.c.b16 %v115, %v113
  %v146 = vpack.c.b16 %v116, %v114
  %v147 = vpack.c.b16 %v119, %v117
  %v148 = vpack.c.b16 %v120, %v118
  %v149 = vpack.c.b16 %v123, %v121
  %v150 = vpack.c.b16 %v124, %v122
  %v151 = vpack.c.b16 %v127, %v125
  %v152 = vpack.c.b16 %v128, %v126
  %v153 = vpack.c.b16 %v131, %v129
  %v154 = vpack.c.b16 %v132, %v130
  %v155 = vpack.c.b16 %v135, %v133
  %v156 = vpack.c.b16 %v136, %v134
  %v157 = vpack.c.b16 %v139, %v137
  %v158 = vpack.c.b16 %v140, %v138
  %v159 = vpack.c.b16 %v143, %v141
  %v160 = vpack.c.b16 %v144, %v142
  %177 = vmatpush.bf16.msra.mxu0 %v159
  %178 = vmatpush.bf16.msra.mxu0 %v157
  %179 = vmatpush.bf16.msra.mxu0 %v155
  %180 = vmatpush.bf16.msra.mxu0 %v153
  %181 = vmatpush.bf16.msra.mxu0 %v151
  %182 = vmatpush.bf16.msra.mxu0 %v149
  %183 = vmatpush.bf16.msra.mxu0 %v147
  %184 = vmatpush.bf16.msra.mxu0 %v145
  %185 = vmatmul.bf16.gmra.mxu0 %v81
  %v186 = vpop.f32.mrf.mxu0
  %v187 = vadd.f32 0.0, %v186
  %v188 = vpop.f32.mrf.mxu0
  %v189 = vadd.f32 0.0, %v188
  %190 = vmatmul.bf16.gmra.mxu0 %v82
  %v191 = vpop.f32.mrf.mxu0
  %v192 = vadd.f32 0.0, %v191
  %v193 = vpop.f32.mrf.mxu0
  %v194 = vadd.f32 0.0, %v193
  %195 = vmatmul.bf16.gmra.mxu0 %v83
  %v196 = vpop.f32.mrf.mxu0
  %v197 = vadd.f32 0.0, %v196
  %v198 = vpop.f32.mrf.mxu0
  %v199 = vadd.f32 0.0, %v198
  %200 = vmatmul.bf16.gmra.mxu0 %v84
  %v201 = vpop.f32.mrf.mxu0
  %v202 = vadd.f32 0.0, %v201
  %v203 = vpop.f32.mrf.mxu0
  %v204 = vadd.f32 0.0, %v203
  %205 = vmatmul.bf16.gmra.mxu0 %v85
  %v206 = vpop.f32.mrf.mxu0
  %v207 = vadd.f32 0.0, %v206
  %v208 = vpop.f32.mrf.mxu0
  %v209 = vadd.f32 0.0, %v208
  %210 = vmatmul.bf16.gmra.mxu0 %v86
  %v211 = vpop.f32.mrf.mxu0
  %v212 = vadd.f32 0.0, %v211
  %v213 = vpop.f32.mrf.mxu0
  %v214 = vadd.f32 0.0, %v213
  %215 = vmatmul.bf16.gmra.mxu0 %v87
  %v216 = vpop.f32.mrf.mxu0
  %v217 = vadd.f32 0.0, %v216
  %v218 = vpop.f32.mrf.mxu0
  %v219 = vadd.f32 0.0, %v218
  %220 = vmatmul.bf16.gmra.mxu0 %v88
  %v221 = vpop.f32.mrf.mxu0
  %v222 = vadd.f32 0.0, %v221
  %v223 = vpop.f32.mrf.mxu0
  %v224 = vadd.f32 0.0, %v223
  %225 = vdwg.mxu0
  %226 = vmatpush.bf16.msra.mxu0 %v160
  %227 = vmatpush.bf16.msra.mxu0 %v158
  %228 = vmatpush.bf16.msra.mxu0 %v156
  %229 = vmatpush.bf16.msra.mxu0 %v154
  %230 = vmatpush.bf16.msra.mxu0 %v152
  %231 = vmatpush.bf16.msra.mxu0 %v150
  %232 = vmatpush.bf16.msra.mxu0 %v148
  %233 = vmatpush.bf16.msra.mxu0 %v146
  %234 = vmatmul.bf16.gmra.mxu0 %v81
  %v235 = vpop.f32.mrf.mxu0
  %v236 = vadd.f32 0.0, %v235
  %v237 = vpop.f32.mrf.mxu0
  %v238 = vadd.f32 0.0, %v237
  %239 = vmatmul.bf16.gmra.mxu0 %v82
  %v240 = vpop.f32.mrf.mxu0
  %v241 = vadd.f32 0.0, %v240
  %v242 = vpop.f32.mrf.mxu0
  %v243 = vadd.f32 0.0, %v242
  %244 = vmatmul.bf16.gmra.mxu0 %v83
  %v245 = vpop.f32.mrf.mxu0
  %v246 = vadd.f32 0.0, %v245
  %v247 = vpop.f32.mrf.mxu0
  %v248 = vadd.f32 0.0, %v247
  %249 = vmatmul.bf16.gmra.mxu0 %v84
  %v250 = vpop.f32.mrf.mxu0
  %v251 = vadd.f32 0.0, %v250
  %v252 = vpop.f32.mrf.mxu0
  %v253 = vadd.f32 0.0, %v252
  %254 = vmatmul.bf16.gmra.mxu0 %v85
  %v255 = vpop.f32.mrf.mxu0
  %v256 = vadd.f32 0.0, %v255
  %v257 = vpop.f32.mrf.mxu0
  %v258 = vadd.f32 0.0, %v257
  %259 = vmatmul.bf16.gmra.mxu0 %v86
  %v260 = vpop.f32.mrf.mxu0
  %v261 = vadd.f32 0.0, %v260
  %v262 = vpop.f32.mrf.mxu0
  %v263 = vadd.f32 0.0, %v262
  %264 = vmatmul.bf16.gmra.mxu0 %v87
  %v265 = vpop.f32.mrf.mxu0
  %v266 = vadd.f32 0.0, %v265
  %v267 = vpop.f32.mrf.mxu0
  %v268 = vadd.f32 0.0, %v267
  %269 = vmatmul.bf16.gmra.mxu0 %v88
  %v270 = vpop.f32.mrf.mxu0
  %v271 = vadd.f32 0.0, %v270
  %v272 = vpop.f32.mrf.mxu0
  %v273 = vadd.f32 0.0, %v272
  %274 = vdwg.mxu0
  %v275 = vld [vmem:[%s1] sm:$0xf]
  %v276 = vld [vmem:[%s1 + $0x4] sm:$0xf]
  %v277 = vld [vmem:[%s1 + $0x8] sm:$0xf]
  %v278 = vld [vmem:[%s1 + $0xc] sm:$0xf]
  %v279 = vld [vmem:[%s1 + $0x10] sm:$0xf]
  %v280 = vld [vmem:[%s1 + $0x14] sm:$0xf]
  %v281 = vld [vmem:[%s1 + $0x18] sm:$0xf]
  %v282 = vld [vmem:[%s1 + $0x1c] sm:$0xf]
  %v283 = vld [vmem:[%s1 + $0x20] sm:$0xf]
  %v284 = vld [vmem:[%s1 + $0x24] sm:$0xf]
  %v285 = vld [vmem:[%s1 + $0x28] sm:$0xf]
  %v286 = vld [vmem:[%s1 + $0x2c] sm:$0xf]
  %v287 = vld [vmem:[%s1 + $0x30] sm:$0xf]
  %v288 = vld [vmem:[%s1 + $0x34] sm:$0xf]
  %v289 = vld [vmem:[%s1 + $0x38] sm:$0xf]
  %v290 = vld [vmem:[%s1 + $0x3c] sm:$0xf]
  %v307 = vunpack.c.l.b16 %v275
  %v308 = vunpack.c.l.b16 %v276
  %v309 = vunpack.c.l.b16 %v277
  %v310 = vunpack.c.l.b16 %v278
  %v311 = vunpack.c.l.b16 %v279
  %v312 = vunpack.c.l.b16 %v280
  %v313 = vunpack.c.l.b16 %v281
  %v314 = vunpack.c.l.b16 %v282
  %v315 = vunpack.c.l.b16 %v283
  %v316 = vunpack.c.l.b16 %v284
  %v317 = vunpack.c.l.b16 %v285
  %v318 = vunpack.c.l.b16 %v286
  %v319 = vunpack.c.l.b16 %v287
  %v320 = vunpack.c.l.b16 %v288
  %v321 = vunpack.c.l.b16 %v289
  %v322 = vunpack.c.l.b16 %v290
  %v323 = vpack.c.b16 %v308, %v307
  %v324 = vpack.c.b16 %v310, %v309
  %v325 = vpack.c.b16 %v312, %v311
  %v326 = vpack.c.b16 %v314, %v313
  %v327 = vpack.c.b16 %v316, %v315
  %v328 = vpack.c.b16 %v318, %v317
  %v329 = vpack.c.b16 %v320, %v319
  %v330 = vpack.c.b16 %v322, %v321
  %339 = vmatpush.bf16.msra.mxu0 %v159
  %340 = vmatpush.bf16.msra.mxu0 %v157
  %341 = vmatpush.bf16.msra.mxu0 %v155
  %342 = vmatpush.bf16.msra.mxu0 %v153
  %343 = vmatpush.bf16.msra.mxu0 %v151
  %344 = vmatpush.bf16.msra.mxu0 %v149
  %345 = vmatpush.bf16.msra.mxu0 %v147
  %346 = vmatpush.bf16.msra.mxu0 %v145
  %347 = vmatmul.bf16.gmra.mxu0 %v323
  %v348 = vpop.f32.mrf.mxu0
  %v349 = vadd.f32 0.0, %v348
  %v350 = vpop.f32.mrf.mxu0
  %v351 = vadd.f32 0.0, %v350
  %352 = vmatmul.bf16.gmra.mxu0 %v324
  %v353 = vpop.f32.mrf.mxu0
  %v354 = vadd.f32 0.0, %v353
  %v355 = vpop.f32.mrf.mxu0
  %v356 = vadd.f32 0.0, %v355
  %357 = vmatmul.bf16.gmra.mxu0 %v325
  %v358 = vpop.f32.mrf.mxu0
  %v359 = vadd.f32 0.0, %v358
  %v360 = vpop.f32.mrf.mxu0
  %v361 = vadd.f32 0.0, %v360
  %362 = vmatmul.bf16.gmra.mxu0 %v326
  %v363 = vpop.f32.mrf.mxu0
  %v364 = vadd.f32 0.0, %v363
  %v365 = vpop.f32.mrf.mxu0
  %v366 = vadd.f32 0.0, %v365
  %367 = vmatmul.bf16.gmra.mxu0 %v327
  %v368 = vpop.f32.mrf.mxu0
  %v369 = vadd.f32 0.0, %v368
  %v370 = vpop.f32.mrf.mxu0
  %v371 = vadd.f32 0.0, %v370
  %372 = vmatmul.bf16.gmra.mxu0 %v328
  %v373 = vpop.f32.mrf.mxu0
  %v374 = vadd.f32 0.0, %v373
  %v375 = vpop.f32.mrf.mxu0
  %v376 = vadd.f32 0.0, %v375
  %377 = vmatmul.bf16.gmra.mxu0 %v329
  %v378 = vpop.f32.mrf.mxu0
  %v379 = vadd.f32 0.0, %v378
  %v380 = vpop.f32.mrf.mxu0
  %v381 = vadd.f32 0.0, %v380
  %382 = vmatmul.bf16.gmra.mxu0 %v330
  %v383 = vpop.f32.mrf.mxu0
  %v384 = vadd.f32 0.0, %v383
  %v385 = vpop.f32.mrf.mxu0
  %v386 = vadd.f32 0.0, %v385
  %387 = vdwg.mxu0
  %388 = vmatpush.bf16.msra.mxu0 %v160
  %389 = vmatpush.bf16.msra.mxu0 %v158
  %390 = vmatpush.bf16.msra.mxu0 %v156
  %391 = vmatpush.bf16.msra.mxu0 %v154
  %392 = vmatpush.bf16.msra.mxu0 %v152
  %393 = vmatpush.bf16.msra.mxu0 %v150
  %394 = vmatpush.bf16.msra.mxu0 %v148
  %395 = vmatpush.bf16.msra.mxu0 %v146
  %396 = vmatmul.bf16.gmra.mxu0 %v323
  %v397 = vpop.f32.mrf.mxu0
  %v398 = vadd.f32 0.0, %v397
  %v399 = vpop.f32.mrf.mxu0
  %v400 = vadd.f32 0.0, %v399
  %401 = vmatmul.bf16.gmra.mxu0 %v324
  %v402 = vpop.f32.mrf.mxu0
  %v403 = vadd.f32 0.0, %v402
  %v404 = vpop.f32.mrf.mxu0
  %v405 = vadd.f32 0.0, %v404
  %406 = vmatmul.bf16.gmra.mxu0 %v325
  %v407 = vpop.f32.mrf.mxu0
  %v408 = vadd.f32 0.0, %v407
  %v409 = vpop.f32.mrf.mxu0
  %v410 = vadd.f32 0.0, %v409
  %411 = vmatmul.bf16.gmra.mxu0 %v326
  %v412 = vpop.f32.mrf.mxu0
  %v413 = vadd.f32 0.0, %v412
  %v414 = vpop.f32.mrf.mxu0
  %v415 = vadd.f32 0.0, %v414
  %416 = vmatmul.bf16.gmra.mxu0 %v327
  %v417 = vpop.f32.mrf.mxu0
  %v418 = vadd.f32 0.0, %v417
  %v419 = vpop.f32.mrf.mxu0
  %v420 = vadd.f32 0.0, %v419
  %421 = vmatmul.bf16.gmra.mxu0 %v328
  %v422 = vpop.f32.mrf.mxu0
  %v423 = vadd.f32 0.0, %v422
  %v424 = vpop.f32.mrf.mxu0
  %v425 = vadd.f32 0.0, %v424
  %426 = vmatmul.bf16.gmra.mxu0 %v329
  %v427 = vpop.f32.mrf.mxu0
  %v428 = vadd.f32 0.0, %v427
  %v429 = vpop.f32.mrf.mxu0
  %v430 = vadd.f32 0.0, %v429
  %431 = vmatmul.bf16.gmra.mxu0 %v330
  %v432 = vpop.f32.mrf.mxu0
  %v433 = vadd.f32 0.0, %v432
  %v434 = vpop.f32.mrf.mxu0
  %v435 = vadd.f32 0.0, %v434
  %436 = vdwg.mxu0
  %v437 = vmul.f32 %v187, %v349
  %v438 = vmul.f32 %v189, %v351
  %v439 = vmul.f32 %v192, %v354
  %v440 = vmul.f32 %v194, %v356
  %v441 = vmul.f32 %v197, %v359
  %v442 = vmul.f32 %v199, %v361
  %v443 = vmul.f32 %v202, %v364
  %v444 = vmul.f32 %v204, %v366
  %v445 = vmul.f32 %v207, %v369
  %v446 = vmul.f32 %v209, %v371
  %v447 = vmul.f32 %v212, %v374
  %v448 = vmul.f32 %v214, %v376
  %v449 = vmul.f32 %v217, %v379
  %v450 = vmul.f32 %v219, %v381
  %v451 = vmul.f32 %v222, %v384
  %v452 = vmul.f32 %v224, %v386
  %v453 = vmul.f32 %v236, %v398
  %v454 = vmul.f32 %v238, %v400
  %v455 = vmul.f32 %v241, %v403
  %v456 = vmul.f32 %v243, %v405
  %v457 = vmul.f32 %v246, %v408
  %v458 = vmul.f32 %v248, %v410
  %v459 = vmul.f32 %v251, %v413
  %v460 = vmul.f32 %v253, %v415
  %v461 = vmul.f32 %v256, %v418
  %v462 = vmul.f32 %v258, %v420
  %v463 = vmul.f32 %v261, %v423
  %v464 = vmul.f32 %v263, %v425
  %v465 = vmul.f32 %v266, %v428
  %v466 = vmul.f32 %v268, %v430
  %v467 = vmul.f32 %v271, %v433
  %v468 = vmul.f32 %v273, %v435
  %v469 = vadd.f32 %v437, %v453
  %v470 = vadd.f32 %v438, %v454
  %v471 = vadd.f32 %v439, %v455
  %v472 = vadd.f32 %v440, %v456
  %v473 = vadd.f32 %v441, %v457
  %v474 = vadd.f32 %v442, %v458
  %v475 = vadd.f32 %v443, %v459
  %v476 = vadd.f32 %v444, %v460
  %v477 = vadd.f32 %v445, %v461
  %v478 = vadd.f32 %v446, %v462
  %v479 = vadd.f32 %v447, %v463
  %v480 = vadd.f32 %v448, %v464
  %v481 = vadd.f32 %v449, %v465
  %v482 = vadd.f32 %v450, %v466
  %v483 = vadd.f32 %v451, %v467
  %v484 = vadd.f32 %v452, %v468
  %v485 = vmul.f32 %v236, %v349
  %v486 = vmul.f32 %v238, %v351
  %v487 = vmul.f32 %v241, %v354
  %v488 = vmul.f32 %v243, %v356
  %v489 = vmul.f32 %v246, %v359
  %v490 = vmul.f32 %v248, %v361
  %v491 = vmul.f32 %v251, %v364
  %v492 = vmul.f32 %v253, %v366
  %v493 = vmul.f32 %v256, %v369
  %v494 = vmul.f32 %v258, %v371
  %v495 = vmul.f32 %v261, %v374
  %v496 = vmul.f32 %v263, %v376
  %v497 = vmul.f32 %v266, %v379
  %v498 = vmul.f32 %v268, %v381
  %v499 = vmul.f32 %v271, %v384
  %v500 = vmul.f32 %v273, %v386
  %v501 = vmul.f32 %v187, %v398
  %v502 = vmul.f32 %v189, %v400
  %v503 = vmul.f32 %v192, %v403
  %v504 = vmul.f32 %v194, %v405
  %v505 = vmul.f32 %v197, %v408
  %v506 = vmul.f32 %v199, %v410
  %v507 = vmul.f32 %v202, %v413
  %v508 = vmul.f32 %v204, %v415
  %v509 = vmul.f32 %v207, %v418
  %v510 = vmul.f32 %v209, %v420
  %v511 = vmul.f32 %v212, %v423
  %v512 = vmul.f32 %v214, %v425
  %v513 = vmul.f32 %v217, %v428
  %v514 = vmul.f32 %v219, %v430
  %v515 = vmul.f32 %v222, %v433
  %v516 = vmul.f32 %v224, %v435
  %v517 = vsub.f32 %v485, %v501
  %v518 = vsub.f32 %v486, %v502
  %v519 = vsub.f32 %v487, %v503
  %v520 = vsub.f32 %v488, %v504
  %v521 = vsub.f32 %v489, %v505
  %v522 = vsub.f32 %v490, %v506
  %v523 = vsub.f32 %v491, %v507
  %v524 = vsub.f32 %v492, %v508
  %v525 = vsub.f32 %v493, %v509
  %v526 = vsub.f32 %v494, %v510
  %v527 = vsub.f32 %v495, %v511
  %v528 = vsub.f32 %v496, %v512
  %v529 = vsub.f32 %v497, %v513
  %v530 = vsub.f32 %v498, %v514
  %v531 = vsub.f32 %v499, %v515
  %v532 = vsub.f32 %v500, %v516
  %v533 = vpack.c.bf16 %v469, %v469
  %v534 = vpack.c.bf16 %v470, %v470
  %v535 = vpack.c.bf16 %v471, %v471
  %v536 = vpack.c.bf16 %v472, %v472
  %v537 = vpack.c.bf16 %v473, %v473
  %v538 = vpack.c.bf16 %v474, %v474
  %v539 = vpack.c.bf16 %v475, %v475
  %v540 = vpack.c.bf16 %v476, %v476
  %v541 = vpack.c.bf16 %v477, %v477
  %v542 = vpack.c.bf16 %v478, %v478
  %v543 = vpack.c.bf16 %v479, %v479
  %v544 = vpack.c.bf16 %v480, %v480
  %v545 = vpack.c.bf16 %v481, %v481
  %v546 = vpack.c.bf16 %v482, %v482
  %v547 = vpack.c.bf16 %v483, %v483
  %v548 = vpack.c.bf16 %v484, %v484
  %v549 = vpack.c.bf16 %v517, %v517
  %v550 = vpack.c.bf16 %v518, %v518
  %v551 = vpack.c.bf16 %v519, %v519
  %v552 = vpack.c.bf16 %v520, %v520
  %v553 = vpack.c.bf16 %v521, %v521
  %v554 = vpack.c.bf16 %v522, %v522
  %v555 = vpack.c.bf16 %v523, %v523
  %v556 = vpack.c.bf16 %v524, %v524
  %v557 = vpack.c.bf16 %v525, %v525
  %v558 = vpack.c.bf16 %v526, %v526
  %v559 = vpack.c.bf16 %v527, %v527
  %v560 = vpack.c.bf16 %v528, %v528
  %v561 = vpack.c.bf16 %v529, %v529
  %v562 = vpack.c.bf16 %v530, %v530
  %v563 = vpack.c.bf16 %v531, %v531
  %v564 = vpack.c.bf16 %v532, %v532
  %v581 = vunpack.c.l.b16 %v533
  %v582 = vunpack.c.l.b16 %v534
  %v583 = vunpack.c.l.b16 %v535
  %v584 = vunpack.c.l.b16 %v536
  %v585 = vunpack.c.l.b16 %v537
  %v586 = vunpack.c.l.b16 %v538
  %v587 = vunpack.c.l.b16 %v539
  %v588 = vunpack.c.l.b16 %v540
  %v589 = vunpack.c.l.b16 %v541
  %v590 = vunpack.c.l.b16 %v542
  %v591 = vunpack.c.l.b16 %v543
  %v592 = vunpack.c.l.b16 %v544
  %v593 = vunpack.c.l.b16 %v545
  %v594 = vunpack.c.l.b16 %v546
  %v595 = vunpack.c.l.b16 %v547
  %v596 = vunpack.c.l.b16 %v548
  %v597 = vpack.c.b16 %v582, %v581
  %v598 = vpack.c.b16 %v584, %v583
  %v599 = vpack.c.b16 %v586, %v585
  %v600 = vpack.c.b16 %v588, %v587
  %v601 = vpack.c.b16 %v590, %v589
  %v602 = vpack.c.b16 %v592, %v591
  %v603 = vpack.c.b16 %v594, %v593
  %v604 = vpack.c.b16 %v596, %v595
  %v629 = vunpack.c.l.b16 %v549
  %v630 = vunpack.c.l.b16 %v550
  %v631 = vunpack.c.l.b16 %v551
  %v632 = vunpack.c.l.b16 %v552
  %v633 = vunpack.c.l.b16 %v553
  %v634 = vunpack.c.l.b16 %v554
  %v635 = vunpack.c.l.b16 %v555
  %v636 = vunpack.c.l.b16 %v556
  %v637 = vunpack.c.l.b16 %v557
  %v638 = vunpack.c.l.b16 %v558
  %v639 = vunpack.c.l.b16 %v559
  %v640 = vunpack.c.l.b16 %v560
  %v641 = vunpack.c.l.b16 %v561
  %v642 = vunpack.c.l.b16 %v562
  %v643 = vunpack.c.l.b16 %v563
  %v644 = vunpack.c.l.b16 %v564
  %v645 = vpack.c.b16 %v630, %v629
  %v646 = vpack.c.b16 %v632, %v631
  %v647 = vpack.c.b16 %v634, %v633
  %v648 = vpack.c.b16 %v636, %v635
  %v649 = vpack.c.b16 %v638, %v637
  %v650 = vpack.c.b16 %v640, %v639
  %v651 = vpack.c.b16 %v642, %v641
  %v652 = vpack.c.b16 %v644, %v643
  %v661 = vld [vmem:[%s3] sm:$0xf]
  %v662 = vld [vmem:[%s3 + $0x4] sm:$0xf]
  %v663 = vld [vmem:[%s3 + $0x8] sm:$0xf]
  %v664 = vld [vmem:[%s3 + $0xc] sm:$0xf]
  %v665 = vld [vmem:[%s3 + $0x10] sm:$0xf]
  %v666 = vld [vmem:[%s3 + $0x14] sm:$0xf]
  %v667 = vld [vmem:[%s3 + $0x18] sm:$0xf]
  %v668 = vld [vmem:[%s3 + $0x1c] sm:$0xf]
  %v669 = vld [vmem:[%s3 + $0x20] sm:$0xf]
  %v670 = vld [vmem:[%s3 + $0x24] sm:$0xf]
  %v671 = vld [vmem:[%s3 + $0x28] sm:$0xf]
  %v672 = vld [vmem:[%s3 + $0x2c] sm:$0xf]
  %v673 = vld [vmem:[%s3 + $0x30] sm:$0xf]
  %v674 = vld [vmem:[%s3 + $0x34] sm:$0xf]
  %v675 = vld [vmem:[%s3 + $0x38] sm:$0xf]
  %v676 = vld [vmem:[%s3 + $0x3c] sm:$0xf]
  %v677 = vld [vmem:[%s3 + $0x40] sm:$0xf]
  %v678 = vld [vmem:[%s3 + $0x44] sm:$0xf]
  %v679 = vld [vmem:[%s3 + $0x48] sm:$0xf]
  %v680 = vld [vmem:[%s3 + $0x4c] sm:$0xf]
  %v681 = vld [vmem:[%s3 + $0x50] sm:$0xf]
  %v682 = vld [vmem:[%s3 + $0x54] sm:$0xf]
  %v683 = vld [vmem:[%s3 + $0x58] sm:$0xf]
  %v684 = vld [vmem:[%s3 + $0x5c] sm:$0xf]
  %v685 = vld [vmem:[%s3 + $0x60] sm:$0xf]
  %v686 = vld [vmem:[%s3 + $0x64] sm:$0xf]
  %v687 = vld [vmem:[%s3 + $0x68] sm:$0xf]
  %v688 = vld [vmem:[%s3 + $0x6c] sm:$0xf]
  %v689 = vld [vmem:[%s3 + $0x70] sm:$0xf]
  %v690 = vld [vmem:[%s3 + $0x74] sm:$0xf]
  %v691 = vld [vmem:[%s3 + $0x78] sm:$0xf]
  %v692 = vld [vmem:[%s3 + $0x7c] sm:$0xf]
  %v725 = vunpack.c.l.b16 %v661
  %v726 = vunpack.c.l.b16 %v662
  %v727 = vunpack.c.l.b16 %v663
  %v728 = vunpack.c.l.b16 %v664
  %v729 = vunpack.c.l.b16 %v665
  %v730 = vunpack.c.l.b16 %v666
  %v731 = vunpack.c.l.b16 %v667
  %v732 = vunpack.c.l.b16 %v668
  %v733 = vunpack.c.l.b16 %v669
  %v734 = vunpack.c.l.b16 %v670
  %v735 = vunpack.c.l.b16 %v671
  %v736 = vunpack.c.l.b16 %v672
  %v737 = vunpack.c.l.b16 %v673
  %v738 = vunpack.c.l.b16 %v674
  %v739 = vunpack.c.l.b16 %v675
  %v740 = vunpack.c.l.b16 %v676
  %v741 = vunpack.c.l.b16 %v677
  %v742 = vunpack.c.l.b16 %v678
  %v743 = vunpack.c.l.b16 %v679
  %v744 = vunpack.c.l.b16 %v680
  %v745 = vunpack.c.l.b16 %v681
  %v746 = vunpack.c.l.b16 %v682
  %v747 = vunpack.c.l.b16 %v683
  %v748 = vunpack.c.l.b16 %v684
  %v749 = vunpack.c.l.b16 %v685
  %v750 = vunpack.c.l.b16 %v686
  %v751 = vunpack.c.l.b16 %v687
  %v752 = vunpack.c.l.b16 %v688
  %v753 = vunpack.c.l.b16 %v689
  %v754 = vunpack.c.l.b16 %v690
  %v755 = vunpack.c.l.b16 %v691
  %v756 = vunpack.c.l.b16 %v692
  %v757 = vpack.c.b16 %v726, %v725
  %v758 = vpack.c.b16 %v728, %v727
  %v759 = vpack.c.b16 %v730, %v729
  %v760 = vpack.c.b16 %v732, %v731
  %v761 = vpack.c.b16 %v734, %v733
  %v762 = vpack.c.b16 %v736, %v735
  %v763 = vpack.c.b16 %v738, %v737
  %v764 = vpack.c.b16 %v740, %v739
  %v765 = vpack.c.b16 %v742, %v741
  %v766 = vpack.c.b16 %v744, %v743
  %v767 = vpack.c.b16 %v746, %v745
  %v768 = vpack.c.b16 %v748, %v747
  %v769 = vpack.c.b16 %v750, %v749
  %v770 = vpack.c.b16 %v752, %v751
  %v771 = vpack.c.b16 %v754, %v753
  %v772 = vpack.c.b16 %v756, %v755
  %789 = vmatpush.bf16.msra.mxu0 %v764
  %790 = vmatpush.bf16.msra.mxu0 %v763
  %791 = vmatpush.bf16.msra.mxu0 %v762
  %792 = vmatpush.bf16.msra.mxu0 %v761
  %793 = vmatpush.bf16.msra.mxu0 %v760
  %794 = vmatpush.bf16.msra.mxu0 %v759
  %795 = vmatpush.bf16.msra.mxu0 %v758
  %796 = vmatpush.bf16.msra.mxu0 %v757
  %797 = vmatmul.bf16.gmra.mxu0 %v597
  %v798 = vpop.f32.mrf.mxu0
  %v799 = vadd.f32 0.0, %v798
  %v800 = vpop.f32.mrf.mxu0
  %v801 = vadd.f32 0.0, %v800
  %802 = vmatmul.bf16.gmra.mxu0 %v598
  %v803 = vpop.f32.mrf.mxu0
  %v804 = vadd.f32 0.0, %v803
  %v805 = vpop.f32.mrf.mxu0
  %v806 = vadd.f32 0.0, %v805
  %807 = vmatmul.bf16.gmra.mxu0 %v599
  %v808 = vpop.f32.mrf.mxu0
  %v809 = vadd.f32 0.0, %v808
  %v810 = vpop.f32.mrf.mxu0
  %v811 = vadd.f32 0.0, %v810
  %812 = vmatmul.bf16.gmra.mxu0 %v600
  %v813 = vpop.f32.mrf.mxu0
  %v814 = vadd.f32 0.0, %v813
  %v815 = vpop.f32.mrf.mxu0
  %v816 = vadd.f32 0.0, %v815
  %817 = vmatmul.bf16.gmra.mxu0 %v601
  %v818 = vpop.f32.mrf.mxu0
  %v819 = vadd.f32 0.0, %v818
  %v820 = vpop.f32.mrf.mxu0
  %v821 = vadd.f32 0.0, %v820
  %822 = vmatmul.bf16.gmra.mxu0 %v602
  %v823 = vpop.f32.mrf.mxu0
  %v824 = vadd.f32 0.0, %v823
  %v825 = vpop.f32.mrf.mxu0
  %v826 = vadd.f32 0.0, %v825
  %827 = vmatmul.bf16.gmra.mxu0 %v603
  %v828 = vpop.f32.mrf.mxu0
  %v829 = vadd.f32 0.0, %v828
  %v830 = vpop.f32.mrf.mxu0
  %v831 = vadd.f32 0.0, %v830
  %832 = vmatmul.bf16.gmra.mxu0 %v604
  %v833 = vpop.f32.mrf.mxu0
  %v834 = vadd.f32 0.0, %v833
  %v835 = vpop.f32.mrf.mxu0
  %v836 = vadd.f32 0.0, %v835
  %837 = vdwg.mxu0
  %838 = vmatpush.bf16.msra.mxu0 %v772
  %839 = vmatpush.bf16.msra.mxu0 %v771
  %840 = vmatpush.bf16.msra.mxu0 %v770
  %841 = vmatpush.bf16.msra.mxu0 %v769
  %842 = vmatpush.bf16.msra.mxu0 %v768
  %843 = vmatpush.bf16.msra.mxu0 %v767
  %844 = vmatpush.bf16.msra.mxu0 %v766
  %845 = vmatpush.bf16.msra.mxu0 %v765
  %846 = vmatmul.bf16.gmra.mxu0 %v645
  %v847 = vpop.f32.mrf.mxu0
  %v848 = vadd.f32 %v799, %v847
  %v849 = vpop.f32.mrf.mxu0
  %v850 = vadd.f32 %v801, %v849
  %851 = vmatmul.bf16.gmra.mxu0 %v646
  %v852 = vpop.f32.mrf.mxu0
  %v853 = vadd.f32 %v804, %v852
  %v854 = vpop.f32.mrf.mxu0
  %v855 = vadd.f32 %v806, %v854
  %856 = vmatmul.bf16.gmra.mxu0 %v647
  %v857 = vpop.f32.mrf.mxu0
  %v858 = vadd.f32 %v809, %v857
  %v859 = vpop.f32.mrf.mxu0
  %v860 = vadd.f32 %v811, %v859
  %861 = vmatmul.bf16.gmra.mxu0 %v648
  %v862 = vpop.f32.mrf.mxu0
  %v863 = vadd.f32 %v814, %v862
  %v864 = vpop.f32.mrf.mxu0
  %v865 = vadd.f32 %v816, %v864
  %866 = vmatmul.bf16.gmra.mxu0 %v649
  %v867 = vpop.f32.mrf.mxu0
  %v868 = vadd.f32 %v819, %v867
  %v869 = vpop.f32.mrf.mxu0
  %v870 = vadd.f32 %v821, %v869
  %871 = vmatmul.bf16.gmra.mxu0 %v650
  %v872 = vpop.f32.mrf.mxu0
  %v873 = vadd.f32 %v824, %v872
  %v874 = vpop.f32.mrf.mxu0
  %v875 = vadd.f32 %v826, %v874
  %876 = vmatmul.bf16.gmra.mxu0 %v651
  %v877 = vpop.f32.mrf.mxu0
  %v878 = vadd.f32 %v829, %v877
  %v879 = vpop.f32.mrf.mxu0
  %v880 = vadd.f32 %v831, %v879
  %881 = vmatmul.bf16.gmra.mxu0 %v652
  %v882 = vpop.f32.mrf.mxu0
  %v883 = vadd.f32 %v834, %v882
  %v884 = vpop.f32.mrf.mxu0
  %v885 = vadd.f32 %v836, %v884
  %886 = vdwg.mxu0
  %v887 = vpack.c.bf16 %v848, %v848
  %v888 = vpack.c.bf16 %v850, %v850
  %v889 = vpack.c.bf16 %v853, %v853
  %v890 = vpack.c.bf16 %v855, %v855
  %v891 = vpack.c.bf16 %v858, %v858
  %v892 = vpack.c.bf16 %v860, %v860
  %v893 = vpack.c.bf16 %v863, %v863
  %v894 = vpack.c.bf16 %v865, %v865
  %v895 = vpack.c.bf16 %v868, %v868
  %v896 = vpack.c.bf16 %v870, %v870
  %v897 = vpack.c.bf16 %v873, %v873
  %v898 = vpack.c.bf16 %v875, %v875
  %v899 = vpack.c.bf16 %v878, %v878
  %v900 = vpack.c.bf16 %v880, %v880
  %v901 = vpack.c.bf16 %v883, %v883
  %v902 = vpack.c.bf16 %v885, %v885
  %903 = vst [vmem:[%s4] sm:$0xf] %v887
  %904 = vst [vmem:[%s4 + $0x4] sm:$0xf] %v888
  %905 = vst [vmem:[%s4 + $0x8] sm:$0xf] %v889
  %906 = vst [vmem:[%s4 + $0xc] sm:$0xf] %v890
  %907 = vst [vmem:[%s4 + $0x10] sm:$0xf] %v891
  %908 = vst [vmem:[%s4 + $0x14] sm:$0xf] %v892
  %909 = vst [vmem:[%s4 + $0x18] sm:$0xf] %v893
  %910 = vst [vmem:[%s4 + $0x1c] sm:$0xf] %v894
  %911 = vst [vmem:[%s4 + $0x20] sm:$0xf] %v895
  %912 = vst [vmem:[%s4 + $0x24] sm:$0xf] %v896
  %913 = vst [vmem:[%s4 + $0x28] sm:$0xf] %v897
  %914 = vst [vmem:[%s4 + $0x2c] sm:$0xf] %v898
  %915 = vst [vmem:[%s4 + $0x30] sm:$0xf] %v899
  %916 = vst [vmem:[%s4 + $0x34] sm:$0xf] %v900
  %917 = vst [vmem:[%s4 + $0x38] sm:$0xf] %v901
  %918 = vst [vmem:[%s4 + $0x3c] sm:$0xf] %v902
  // Predicated region
  $region18: #{compgcn_net_forward.4} parent=0 // pred_check
    _
  $region19: #{compgcn_net_forward.4} parent=0 // pred_check_branch
    %920 = sbr.rel (0) target = $region21
  $region20: #{compgcn_net_forward.4} parent=0 // pred_region
    _
  $region21: #{compgcn_net_forward.4} parent=0 // pred_fallthru
    _
  // Predicated region
  $region22: #{compgcn_net_forward.4} parent=0 // pred_check
    _
  $region23: #{compgcn_net_forward.4} parent=0 // pred_check_branch
    %922 = sbr.rel (0) target = $region25
  $region24: #{compgcn_net_forward.4} parent=0 // pred_region
    _
  $region25: #{compgcn_net_forward.4} parent=0 // pred_fallthru
    _

// kernel: compgcn_net_forward.7
$region0: #{compgcn_net_forward.7}
  #allocation0 [shape = 'u32[]', space=smem, size = 0x4, offset = 0x4, fixed_abs, tag = 'smem constant byte address 0x4 - core index']
  #allocation1 [shape = 'u32[72,128]{1,0:T(1,128)}', space=vmem, size = 0x9000, scoped, tag = 'internal scratch']
  #allocation2 [shape = 'f32[16,128]{1,0:T(8,128)}', space=vmem, size = 0x2000, scoped, tag = 'scratch operand']
  #allocation3 [shape = 's32[1]{0}', space=sflag, size = 0x4, scoped, tag = 'scoped memory for compgcn_net_forward.7']
  #allocation4 [shape = 's32[1]{0:T(128)S(6)}', space=smem, size = 0x200, scoped, tag = 'prefetched SMEM operand 0']
  #allocation5 [shape = 's32[1]{0:T(128)S(6)}', space=smem, size = 0x200, scoped, tag = 'prefetched SMEM operand 1']
  %s0 = inlined_call_operand.<no memory space> [shape: s32[1], index: 0, kind: input, shape index: {}]
  %s1 = inlined_call_operand.<no memory space> [shape: s32[1], index: 1, kind: input, shape index: {}]
  %s2 = inlined_call_operand.vmem [shape: s32[1,128], index: 2, kind: input, shape index: {}]
  %s3 = inlined_call_operand.vmem [shape: bf16[128,128], index: 3, kind: input, shape index: {}]
  %s4 = inlined_call_operand.vmem [shape: bf16[128,128], index: 4, kind: input, shape index: {}]
  %s5 = inlined_call_operand.vmem [shape: f32[1,128], index: 5, kind: input, shape index: {}]
  %s6 = inlined_call_operand.hbm [shape: f32[16,128], index: 6, kind: output, shape index: {}]
  %s7 = sld [smem:[#allocation0]]
  $region38: #{compgcn_net_forward.7} parent=0
    _
  %s9 = ssub.s32 1, %s7
  %s10 = scalar_select 0, %s9, %s7
  %11 = sst [smem:[#allocation4]] %s0
  %12 = sst [smem:[#allocation5]] %s1
  $region1: #{compgcn_net_forward.7} parent=0
    #allocation6 [shape = 'u8[8192]{0}', space=vmem, size = 0x2000, scoped, tag = 'output window, operand 0, single buffered']
    #allocation7 [shape = 's32[1]{0}', space=sflag, size = 0x4, scoped, tag = 'scoped memory for compgcn_net_forward.7']
    %13 = vsyncpa [#allocation7], 0
    // Predicated region
    $region2: #{compgcn_net_forward.7} parent=1 // pred_check
      _
    $region3: #{compgcn_net_forward.7} parent=1 // pred_check_branch
      %15 = sbr.rel (0) target = $region5
    $region4: #{compgcn_net_forward.7} parent=1 // pred_region
      %s16 = sadd.s32 0, 0
      %s17 = sld [smem:[#allocation4 + %s16]]
      %p18 = scmp.lt.s32.totalorder %s17, 0
      %s19 = scalar_select %p18, %s17, 0
      %s20 = scalar_lea.vmem %s2, %s19
      %s21 = sadd.s32 0, 0
      %s22 = sld [smem:[#allocation4 + %s21]]
    $region5: #{compgcn_net_forward.7} parent=1 // pred_fallthru
      _
    // Predicated region
    $region6: #{compgcn_net_forward.7} parent=1 // pred_check
      _
    $region7: #{compgcn_net_forward.7} parent=1 // pred_check_branch
      %24 = sbr.rel (0) target = $region9
    $region8: #{compgcn_net_forward.7} parent=1 // pred_region
      %s25 = sadd.s32 0, 0
      %s26 = sld [smem:[#allocation4 + %s25]]
      %s27 = smul.u32 16, %s26
      %p28 = scmp.lt.s32.totalorder %s27, 15
      %s29 = scalar_select %p28, %s27, 15
      %s30 = smul.addr %s29, 4
      %s31 = scalar_lea.vmem %s3, %s30
      %s32 = sadd.s32 0, 0
      %s33 = sld [smem:[#allocation4 + %s32]]
      %s34 = smul.u32 16, %s33
    $region9: #{compgcn_net_forward.7} parent=1 // pred_fallthru
      _
    // Predicated region
    $region10: #{compgcn_net_forward.7} parent=1 // pred_check
      _
    $region11: #{compgcn_net_forward.7} parent=1 // pred_check_branch
      %36 = sbr.rel (0) target = $region13
    $region12: #{compgcn_net_forward.7} parent=1 // pred_region
      _
    $region13: #{compgcn_net_forward.7} parent=1 // pred_fallthru
      _
    // Predicated region
    $region14: #{compgcn_net_forward.7} parent=1 // pred_check
      _
    $region15: #{compgcn_net_forward.7} parent=1 // pred_check_branch
      %38 = sbr.rel (0) target = $region17
    $region16: #{compgcn_net_forward.7} parent=1 // pred_region
      _
    $region17: #{compgcn_net_forward.7} parent=1 // pred_fallthru
      _
    %s39 = sadd.s32 0, 0
    %s40 = sld [smem:[#allocation4 + %s39]]
    %p41 = scmp.lt.s32.totalorder %s40, 0
    %s42 = scalar_select %p41, %s40, 0
    %s43 = scalar_lea.vmem %s2, %s42
    %s44 = sadd.s32 0, 0
    %s45 = sld [smem:[#allocation4 + %s44]]
    %s46 = smul.u32 16, %s45
    %p47 = scmp.lt.s32.totalorder %s46, 15
    %s48 = scalar_select %p47, %s46, 15
    %s49 = smul.addr %s48, 4
    %s50 = scalar_lea.vmem %s3, %s49
    %s51 = sadd.s32 0, 0
    %s52 = sld [smem:[#allocation4 + %s51]]
    %p53 = scmp.lt.s32.totalorder %s52, 0
    %s54 = scalar_select %p53, %s52, 0
    %s55 = scalar_lea.vmem %s2, %s54
    %s56 = sadd.s32 0, 0
    %s57 = sld [smem:[#allocation4 + %s56]]
    %s58 = sadd.s32 0, 0
    %s59 = sld [smem:[#allocation4 + %s58]]
    %s60 = smul.u32 16, %s59
    %p61 = scmp.lt.s32.totalorder %s60, 15
    %s62 = scalar_select %p61, %s60, 15
    %s63 = smul.addr %s62, 4
    %s64 = scalar_lea.vmem %s3, %s63
    %s65 = sadd.s32 0, 0
    %s66 = sld [smem:[#allocation4 + %s65]]
    %s67 = smul.u32 16, %s66
    %p68 = scmp.eq.s32.totalorder 0, 0
    // Predicated region
    $region18: #{compgcn_net_forward.7} parent=1 // pred_check
      %p69 = pneg %p68
    $region19: #{compgcn_net_forward.7} parent=1 // pred_check_branch
      %71 = sbr.rel (%p69) target = $region21
    $region20: #{compgcn_net_forward.7} parent=1 // pred_region
      %72 = vst [vmem:[#allocation2] sm:$0xff] 0.0
      %73 = vst [vmem:[#allocation2 + $0x8] sm:$0xff] 0.0
    $region21: #{compgcn_net_forward.7} parent=1 // pred_fallthru
      _
    %s74 = sld [smem:[#allocation5]]
    %p75 = scmp.lt.s32.totalorder 0, %s74
    // Predicated region
    $region22: #{compgcn_net_forward.7} parent=1 // pred_check
      %p76 = pneg %p75
    $region23: #{compgcn_net_forward.7} parent=1 // pred_check_branch
      %78 = sbr.rel (%p76) target = $region25
    $region24: #{compgcn_net_forward.7} parent=1 // pred_region
      %s79 = smul.u32 0, 16
      %v80 = vlaneseq
      %v81 = vshrl.u32 %v80, 7
      %v82 = vadd.s32 %v81, 8
      %v83 = vstv %s79
      %v84 = vadd.s32 %v83, %v81
      %v85 = vadd.s32 %v83, %v82
      %v86 = vld [vmem:[%s55] sm:$0x1]
      %v87 = vperm.slane %v86, 0
      %vm88 = vcmp.eq.s32.totalorder %v84, %v87
      %vm89 = vcmp.eq.s32.totalorder %v85, %v87
      %v90 = vsel %vm88, 1, 0
      %v91 = vsel %vm89, 1, 0
      %v92 = vcvt.s32.f32 %v90
      %v93 = vcvt.s32.f32 %v91
      %v94 = vpack.c.bf16 %v93, %v92
      %v95 = vld [vmem:[#allocation2] sm:$0xff]
      %v96 = vld [vmem:[#allocation2 + $0x8] sm:$0xff]
      %v97 = vld [vmem:[%s64] sm:$0xf]
      %v98 = vld [vmem:[%s64 + $0x4] sm:$0xf]
      %v99 = vld [vmem:[%s64 + $0x8] sm:$0xf]
      %v100 = vld [vmem:[%s64 + $0xc] sm:$0xf]
      %v101 = vld [vmem:[%s64 + $0x10] sm:$0xf]
      %v102 = vld [vmem:[%s64 + $0x14] sm:$0xf]
      %v103 = vld [vmem:[%s64 + $0x18] sm:$0xf]
      %v104 = vld [vmem:[%s64 + $0x1c] sm:$0xf]
      %v105 = vld [vmem:[%s64 + $0x20] sm:$0xf]
      %v106 = vld [vmem:[%s64 + $0x24] sm:$0xf]
      %v107 = vld [vmem:[%s64 + $0x28] sm:$0xf]
      %v108 = vld [vmem:[%s64 + $0x2c] sm:$0xf]
      %v109 = vld [vmem:[%s64 + $0x30] sm:$0xf]
      %v110 = vld [vmem:[%s64 + $0x34] sm:$0xf]
      %v111 = vld [vmem:[%s64 + $0x38] sm:$0xf]
      %v112 = vld [vmem:[%s64 + $0x3c] sm:$0xf]
      %v129 = vunpack.c.l.b16 %v97
      %v130 = vunpack.c.l.b16 %v98
      %v131 = vunpack.c.l.b16 %v99
      %v132 = vunpack.c.l.b16 %v100
      %v133 = vunpack.c.l.b16 %v101
      %v134 = vunpack.c.l.b16 %v102
      %v135 = vunpack.c.l.b16 %v103
      %v136 = vunpack.c.l.b16 %v104
      %v137 = vunpack.c.l.b16 %v105
      %v138 = vunpack.c.l.b16 %v106
      %v139 = vunpack.c.l.b16 %v107
      %v140 = vunpack.c.l.b16 %v108
      %v141 = vunpack.c.l.b16 %v109
      %v142 = vunpack.c.l.b16 %v110
      %v143 = vunpack.c.l.b16 %v111
      %v144 = vunpack.c.l.b16 %v112
      %v145 = vpack.c.b16 %v130, %v129
      %v146 = vpack.c.b16 %v132, %v131
      %v147 = vpack.c.b16 %v134, %v133
      %v148 = vpack.c.b16 %v136, %v135
      %v149 = vpack.c.b16 %v138, %v137
      %v150 = vpack.c.b16 %v140, %v139
      %v151 = vpack.c.b16 %v142, %v141
      %v152 = vpack.c.b16 %v144, %v143
      %161 = vmatpush.bf16.msra.mxu0 %v152
      %162 = vmatpush.bf16.msra.mxu0 %v151
      %163 = vmatpush.bf16.msra.mxu0 %v150
      %164 = vmatpush.bf16.msra.mxu0 %v149
      %165 = vmatpush.bf16.msra.mxu0 %v148
      %166 = vmatpush.bf16.msra.mxu0 %v147
      %167 = vmatpush.bf16.msra.mxu0 %v146
      %168 = vmatpush.bf16.msra.mxu0 %v145
      %169 = vmatmul.bf16.gmra.mxu0 %v94
      %v170 = vpop.f32.mrf.mxu0
      %v171 = vadd.f32 0.0, %v170
      %v172 = vpop.f32.mrf.mxu0
      %v173 = vadd.f32 0.0, %v172
      %174 = vdwg.mxu0
      %v175 = vadd.f32 %v95, %v171
      %v176 = vadd.f32 %v96, %v173
      %177 = vst [vmem:[#allocation2] sm:$0xff] %v175
      %178 = vst [vmem:[#allocation2 + $0x8] sm:$0xff] %v176
    $region25: #{compgcn_net_forward.7} parent=1 // pred_fallthru
      _
    // Predicated region
    $region26: #{compgcn_net_forward.7} parent=1 // pred_check
      %p179 = pneg %p68
    $region27: #{compgcn_net_forward.7} parent=1 // pred_check_branch
      %181 = sbr.rel (%p179) target = $region29
    $region28: #{compgcn_net_forward.7} parent=1 // pred_region
      %v182 = vld [vmem:[#allocation2] sm:$0xff]
      %v183 = vld [vmem:[#allocation2 + $0x8] sm:$0xff]
      %v184 = vpack.c.bf16 %v183, %v182
      %v185 = vld [vmem:[%s4] sm:$0xf]
      %v186 = vld [vmem:[%s4 + $0x4] sm:$0xf]
      %v187 = vld [vmem:[%s4 + $0x8] sm:$0xf]
      %v188 = vld [vmem:[%s4 + $0xc] sm:$0xf]
      %v189 = vld [vmem:[%s4 + $0x10] sm:$0xf]
      %v190 = vld [vmem:[%s4 + $0x14] sm:$0xf]
      %v191 = vld [vmem:[%s4 + $0x18] sm:$0xf]
      %v192 = vld [vmem:[%s4 + $0x1c] sm:$0xf]
      %v193 = vld [vmem:[%s4 + $0x20] sm:$0xf]
      %v194 = vld [vmem:[%s4 + $0x24] sm:$0xf]
      %v195 = vld [vmem:[%s4 + $0x28] sm:$0xf]
      %v196 = vld [vmem:[%s4 + $0x2c] sm:$0xf]
      %v197 = vld [vmem:[%s4 + $0x30] sm:$0xf]
      %v198 = vld [vmem:[%s4 + $0x34] sm:$0xf]
      %v199 = vld [vmem:[%s4 + $0x38] sm:$0xf]
      %v200 = vld [vmem:[%s4 + $0x3c] sm:$0xf]
      %v201 = vld [vmem:[%s5] sm:$0x1]
      %v203 = vperm.slane %v201, 0
      %v221 = vunpack.c.l.b16 %v185
      %v222 = vunpack.c.l.b16 %v186
      %v223 = vunpack.c.l.b16 %v187
      %v224 = vunpack.c.l.b16 %v188
      %v225 = vunpack.c.l.b16 %v189
      %v226 = vunpack.c.l.b16 %v190
      %v227 = vunpack.c.l.b16 %v191
      %v228 = vunpack.c.l.b16 %v192
      %v229 = vunpack.c.l.b16 %v193
      %v230 = vunpack.c.l.b16 %v194
      %v231 = vunpack.c.l.b16 %v195
      %v232 = vunpack.c.l.b16 %v196
      %v233 = vunpack.c.l.b16 %v197
      %v234 = vunpack.c.l.b16 %v198
      %v235 = vunpack.c.l.b16 %v199
      %v236 = vunpack.c.l.b16 %v200
      %v237 = vpack.c.b16 %v222, %v221
      %v238 = vpack.c.b16 %v224, %v223
      %v239 = vpack.c.b16 %v226, %v225
      %v240 = vpack.c.b16 %v228, %v227
      %v241 = vpack.c.b16 %v230, %v229
      %v242 = vpack.c.b16 %v232, %v231
      %v243 = vpack.c.b16 %v234, %v233
      %v244 = vpack.c.b16 %v236, %v235
      %253 = vmatpush.bf16.msra.mxu0 %v244
      %254 = vmatpush.bf16.msra.mxu0 %v243
      %255 = vmatpush.bf16.msra.mxu0 %v242
      %256 = vmatpush.bf16.msra.mxu0 %v241
      %257 = vmatpush.bf16.msra.mxu0 %v240
      %258 = vmatpush.bf16.msra.mxu0 %v239
      %259 = vmatpush.bf16.msra.mxu0 %v238
      %260 = vmatpush.bf16.msra.mxu0 %v237
      %261 = vmatmul.bf16.gmra.mxu0 %v184
      %v262 = vpop.f32.mrf.mxu0
      %v263 = vadd.f32 %v203, %v262
      %v264 = vpop.f32.mrf.mxu0
      %v265 = vadd.f32 %v203, %v264
      %266 = vdwg.mxu0
      %267 = vst [vmem:[#allocation6] sm:$0xff] %v263
      %268 = vst [vmem:[#allocation6 + $0x8] sm:$0xff] %v265
    $region29: #{compgcn_net_forward.7} parent=1 // pred_fallthru
      _
    // Predicated region
    $region30: #{compgcn_net_forward.7} parent=1 // pred_check
      _
    $region31: #{compgcn_net_forward.7} parent=1 // pred_check_branch
      %270 = sbr.rel (0) target = $region33
    $region32: #{compgcn_net_forward.7} parent=1 // pred_region
      %272 = vsyncadd [#allocation7], 0
      %s273 = sshll.u32 [#allocation6], 4
      %s274 = int_to_ptr.vmem [resolvable:$true] %s273
      %s275 = sshll.u32 %s6, 4
      %s276 = int_to_ptr.hbm [resolvable:$true] %s275
      %281 = dma.vmem_to_hbm [thread:$0]  %s274, 256, %s276, [#allocation7], 128, 128, 8
    $region33: #{compgcn_net_forward.7} parent=1 // pred_fallthru
      _
    // Predicated region
    $region34: #{compgcn_net_forward.7} parent=1 // pred_check
      _
    $region35: #{compgcn_net_forward.7} parent=1 // pred_check_branch
      %283 = sbr.rel (0) target = $region37
    $region36: #{compgcn_net_forward.7} parent=1 // pred_region
      %285 = dma.done [#allocation7], 256
    $region37: #{compgcn_net_forward.7} parent=1 // pred_fallthru
      _
    %286 = vsyncpa [#allocation7], 1

</llo_original>
